<compile_context>
chip_gen: v6e
topology: v6e:2x2x1
jax: 0.10.0
libtpu: 0.0.40
codegen_flags: <defaults>
</compile_context>

<pallas_src>
import numpy as np
import jax
import jax.numpy as jnp
from jax.experimental import pallas as pl
from jax.experimental.pallas import tpu as pltpu

EPS = 1e-5
LRELU_SLOPE = 0.01      # torch.nn.LeakyReLU default
OUT_LANES = 128         # lane-dense width carried for enc / code / dec


# --------------------------- parameter glue (numpy) ---------------------------

def _toeplitz_conv1d(w, L_in, L_out, stride, pad):
    """Dense M s.t. flat_out = flat_in @ M reproduces Conv1d (cross-correlation).
    Flat order = c*L + l."""
    Cout, Cin, K = w.shape
    M = np.zeros((Cin * L_in, Cout * L_out), dtype=np.float32)
    for o in range(Cout):
        for c in range(Cin):
            for lo in range(L_out):
                base = lo * stride - pad
                for t in range(K):
                    li = base + t
                    if 0 <= li < L_in:
                        M[c * L_in + li, o * L_out + lo] += float(w[o, c, t])
    return M


def _convtranspose_as_conv(w_t, pad, K):
    """ConvTranspose1d(stride=1, padding=pad) == Conv1d with flipped kernel,
    swapped channel axes and padding K-1-pad."""
    w_eq = np.transpose(np.asarray(w_t)[:, :, ::-1], (1, 0, 2)).copy()  # [Cout, Cin, K]
    return w_eq, K - 1 - pad


def _bn_factors(C, L):
    """Skinny factors for per-channel BN on flat [B, C*L] features:
    S:[C*L, C] averages over L; E:[C, C*L] broadcasts back."""
    S = np.kron(np.eye(C, dtype=np.float32), np.full((L, 1), 1.0 / L, dtype=np.float32))
    E = np.kron(np.eye(C, dtype=np.float32), np.ones((1, L), dtype=np.float32))
    return S, E


def _padm(m, rows, cols):
    m = np.asarray(m, np.float32)
    out = np.zeros((rows, cols), np.float32)
    out[:m.shape[0], :m.shape[1]] = m
    return out


def _padv(v, total):
    v = np.asarray(v, np.float32).reshape(-1)
    out = np.zeros((total,), np.float32)
    out[:v.shape[0]] = v
    return out


def _rep(v, L, total):
    return _padv(np.repeat(np.asarray(v, np.float32), L), total)


def _u(key, shape, fan_in):
    bound = 1.0 / np.sqrt(fan_in)
    return np.asarray(jax.random.uniform(key, shape, jnp.float32, -bound, bound))


def _pack_weights(named):
    """Width-aware bin-packing of 2-D (already feature-padded) matrices into one
    256-lane slab.  Matrices wider than 128 lanes span both lane bins; <=128-lane
    matrices are greedily packed into lane bin 0 ([:,0:128]) or bin 1 ([:,128:256]).
    Row offsets 16-aligned (bf16 sublane packing).
    Returns (slab_f32, offs) with offs[name] = (row0, col0, rows, cols)."""
    def rpad(r):
        return ((r + 15) // 16) * 16

    wide = {k: m for k, m in named.items() if m.shape[1] > 128}
    narrow = {k: m for k, m in named.items() if m.shape[1] <= 128}
    offs, row = {}, 0
    for k in sorted(wide):
        m = wide[k]
        offs[k] = (row, 0, m.shape[0], m.shape[1])
        row += rpad(m.shape[0])
    bins = [row, row]
    for k, m in sorted(narrow.items(), key=lambda kv: (-kv[1].shape[0], kv[0])):
        b = 0 if bins[0] <= bins[1] else 1
        offs[k] = (bins[b], 128 * b, m.shape[0], m.shape[1])
        bins[b] += rpad(m.shape[0])
    total = max(max(bins), 16)
    slab = np.zeros((total, 256), np.float32)
    for k, m in named.items():
        r0, c0, r, c = offs[k]
        slab[r0:r0 + r, c0:c0 + c] = np.asarray(m, np.float32)
    return slab, offs


def _pack_biases(named):
    """Pack 1-D vectors into one [1, N] f32 slab; each segment 128-lane aligned."""
    offs, cur = {}, 0
    for name, v in named.items():
        n = int(np.asarray(v).reshape(-1).shape[0])
        offs[name] = (cur, n)
        cur += ((n + 127) // 128) * 128
    slab = np.zeros((1, cur), np.float32)
    for name, v in named.items():
        o, n = offs[name]
        slab[0, o:o + n] = np.asarray(v, np.float32).reshape(-1)
    return slab, offs


# --------------------------------- the kernel ---------------------------------

def _make_kernel(woffs, boffs):
    def kernel(x_ref, y_ref, w_ref, b_ref, out_ref):
        def W(name):
            r0, c0, nr, nc = woffs[name]
            return w_ref[r0:r0 + nr, c0:c0 + nc]          # bf16 static view

        def Bv(name):
            o, n = boffs[name]
            return b_ref[0:1, o:o + n]                    # f32

        def lin(v, wname, bname):
            # bf16 operands on the MXU, f32 accumulation, f32 bias add.
            return jnp.dot(v.astype(jnp.bfloat16), W(wname),
                           preferred_element_type=jnp.float32) + Bv(bname)

        def lrelu(v):
            return jnp.where(v >= 0, v, LRELU_SLOPE * v)

        def stack2(a, b):
            # [1,F] x2 -> [2,F] without concatenate (iota + select).
            rows = jax.lax.broadcasted_iota(jnp.int32, (2, a.shape[1]), 0)
            return jnp.where(rows == 0, a, b)

        def bn_fc(v):
            # BatchNorm1d on [B,F]: batch stats, biased var, identity affine folded out.
            mean = jnp.mean(v, axis=0, keepdims=True)
            d = v - mean
            var = jnp.mean(d * d, axis=0, keepdims=True)
            return d * jax.lax.rsqrt(var + EPS)

        def bn_conv(v, s_name, e_name):
            # One-pass per-channel BN on flat [B, C*L] (zero-padded lanes stay zero):
            #   [mean, E[x^2]] --S--> channel space, var/inv there, --E--> broadcast back.
            m1 = jnp.mean(v, axis=0, keepdims=True)
            m2 = jnp.mean(v * v, axis=0, keepdims=True)
            ch = jnp.dot(stack2(m1, m2).astype(jnp.bfloat16), W(s_name),
                         preferred_element_type=jnp.float32)          # [2, C16]
            mean_c = ch[0:1, :]
            var_c = jnp.maximum(ch[1:2, :] - mean_c * mean_c, 0.0)    # guard cancellation
            inv_c = jax.lax.rsqrt(var_c + EPS)
            mf = jnp.dot(stack2(mean_c, inv_c).astype(jnp.bfloat16), W(e_name),
                         preferred_element_type=jnp.float32)          # [2, F]
            return (v - mf[0:1, :]) * mf[1:2, :]

        # ---------------- ConvEncoder1D ----------------
        x = x_ref[...]                                     # [B, 16] f32
        xm = jnp.mean(x, axis=1, keepdims=True)            # InstanceNorm1d(1), affine=False
        xd = x - xm
        xv = jnp.mean(xd * xd, axis=1, keepdims=True)
        h = xd * jax.lax.rsqrt(xv + EPS)
        h = bn_conv(lrelu(lin(h, 'eM1', 'eb1')), 'S1', 'E1')     # conv1 -> [B, 128] (112 real)
        h = bn_conv(lrelu(lin(h, 'eM2', 'eb2')), 'S2', 'E2')     # conv2 -> [B, 256] (224 real)
        h = bn_fc(lrelu(lin(h, 'ef1w', 'ef1b')))                 # fc1   -> [B, 16]
        enc = lin(h, 'ef2w', 'ef2b')                             # fc2   -> [B, 128] (4 real)

        # -------- DeepFeedForwardNetworkSequential (apply_f=False) --------
        z = bn_fc(lrelu(lin(y_ref[...], 'dw1', 'db1')))
        z = bn_fc(lrelu(lin(z, 'dw2', 'db2')))
        z = bn_fc(lrelu(lin(z, 'dw3', 'db3')))
        code = lin(z, 'dw4', 'db4')                              # [B, 128] (4 real)

        # -------- ConvDecoder1D (apply_f=True, lam=1, f=LeakyReLU) --------
        t = bn_fc(lrelu(lin(code, 'cf1w', 'cf1b')))              # fc1_t  -> [B, 16]
        t = lrelu(lin(t, 'cf2w', 'cf2b'))                        # fc2_t  -> [B, 256] (224 real)
        t = bn_conv(t, 'S2', 'E2')                               # conv1b_t
        t = bn_conv(lrelu(lin(t, 'cM1', 'cb1')), 'S1', 'E1')     # conv1_t -> [B, 128] (112 real)
        dec = lrelu(lin(t, 'cM2', 'cb2'))   # conv2_t -> [B,128] (16 real); pool=identity; f, lam=1

        # -------- lane-dense epilogue: full 128-wide unmasked stores --------
        out_ref[0] = enc
        out_ref[1] = code
        out_ref[2] = dec

    return kernel


# ------------------------------ model builder ---------------------------------

def build_cadfnn(batch=2, conv_shape=16, n_enc=4, num_params=2, seed=0):
    key = jax.random.PRNGKey(seed)
    ks = iter(jax.random.split(key, 32))

    # ---- deterministic example data ----
    x = np.asarray(jax.random.normal(next(ks), (batch, 1, conv_shape), jnp.float32))
    y = np.asarray(jax.random.normal(next(ks), (batch, num_params), jnp.float32))

    L0 = conv_shape                    # 16
    L1 = (L0 + 0 - 3) // 1 + 1         # conv1: pad 0 -> 14
    L2 = (L1 + 2 - 3) // 1 + 1         # conv2: pad 1 -> 14
    F1, F1P = 8 * L1, 128              # 112 -> 128
    F2, F2P = 16 * L2, 256             # 224 -> 256
    C1P, C2P = 16, 16                  # channel dims padded to one sublane tile

    # ---- ConvEncoder1D params ----
    e_c1_w = _u(next(ks), (8, 1, 3), 1 * 3);  e_c1_b = _u(next(ks), (8,), 1 * 3)
    e_c2_w = _u(next(ks), (16, 8, 3), 8 * 3); e_c2_b = _u(next(ks), (16,), 8 * 3)
    e_f1_w = _u(next(ks), (16, F2), F2);      e_f1_b = _u(next(ks), (16,), F2)
    e_f2_w = _u(next(ks), (n_enc, 16), 16);   e_f2_b = _u(next(ks), (n_enc,), 16)

    # ---- DeepFeedForwardNetworkSequential params ----
    d_w1 = _u(next(ks), (12, num_params), num_params); d_b1 = _u(next(ks), (12,), num_params)
    d_w2 = _u(next(ks), (36, 12), 12);    d_b2 = _u(next(ks), (36,), 12)
    d_w3 = _u(next(ks), (12, 36), 36);    d_b3 = _u(next(ks), (12,), 36)
    d_w4 = _u(next(ks), (n_enc, 12), 12); d_b4 = _u(next(ks), (n_enc,), 12)

    # ---- ConvDecoder1D params (conv_shape_list = [16, 14, 14]) ----
    c_f1_w = _u(next(ks), (16, n_enc), n_enc); c_f1_b = _u(next(ks), (16,), n_enc)
    c_f2_w = _u(next(ks), (F2, 16), 16);       c_f2_b = _u(next(ks), (F2,), 16)
    c_t1_w = _u(next(ks), (16, 8, 3), 8 * 3);  c_t1_b = _u(next(ks), (8,), 8 * 3)   # ConvT(16,8,3,p=1)
    c_t2_w = _u(next(ks), (8, 1, 3), 1 * 3);   c_t2_b = _u(next(ks), (1,), 1 * 3)   # ConvT(8,1,3,p=0)

    # Conv / ConvTranspose -> Toeplitz matmuls (built at real sizes, then lane-padded)
    eM1 = _toeplitz_conv1d(e_c1_w, L0, L1, 1, 0)                   # [16, 112]
    eM2 = _toeplitz_conv1d(e_c2_w, L1, L2, 1, 1)                   # [112, 224]
    w_eq1, p_eq1 = _convtranspose_as_conv(c_t1_w, pad=1, K=3)
    w_eq2, p_eq2 = _convtranspose_as_conv(c_t2_w, pad=0, K=3)
    cM1 = _toeplitz_conv1d(w_eq1, L2, L2, 1, p_eq1)                # [224, 112]
    cM2 = _toeplitz_conv1d(w_eq2, L2, L0, 1, p_eq2)                # [112, 16]

    # Skinny per-channel BN factors
    S1, E1 = _bn_factors(8, L1)                                    # [112,8], [8,112]
    S2, E2 = _bn_factors(16, L2)                                   # [224,16], [16,224]

    # ---- feature-padded logical matrices (zero padding is semantically inert) ----
    mats = {
        'eM1': _padm(eM1, 16, F1P),
        'eM2': _padm(eM2, F1P, F2P),
        'S1': _padm(S1, F1P, C1P), 'E1': _padm(E1, C1P, F1P),
        'S2': _padm(S2, F2P, C2P), 'E2': _padm(E2, C2P, F2P),
        'ef1w': _padm(e_f1_w.T, F2P, 16),
        'ef2w': _padm(e_f2_w.T, 16, OUT_LANES),
        'dw1': d_w1.T.copy(), 'dw2': d_w2.T.copy(), 'dw3': d_w3.T.copy(),
        'dw4': _padm(d_w4.T, 12, OUT_LANES),
        'cf1w': _padm(c_f1_w.T, OUT_LANES, 16),
        'cf2w': _padm(c_f2_w.T, 16, F2P),
        'cM1': _padm(cM1, F2P, F1P),
        'cM2': _padm(cM2, F1P, OUT_LANES),
    }
    vecs = {
        'eb1': _rep(e_c1_b, L1, F1P), 'eb2': _rep(e_c2_b, L2, F2P),
        'ef1b': e_f1_b, 'ef2b': _padv(e_f2_b, OUT_LANES),
        'db1': d_b1, 'db2': d_b2, 'db3': d_b3, 'db4': _padv(d_b4, OUT_LANES),
        'cf1b': c_f1_b, 'cf2b': _padv(c_f2_b, F2P),
        'cb1': _rep(c_t1_b, L2, F1P), 'cb2': _rep(c_t2_b, L0, OUT_LANES),
    }

    w_slab_np, woffs = _pack_weights(mats)
    b_slab_np, boffs = _pack_biases(vecs)
    w_slab = jnp.asarray(w_slab_np, dtype=jnp.bfloat16)   # bf16 MXU operands
    b_slab = jnp.asarray(b_slab_np)                        # biases stay f32

    kernel = _make_kernel(woffs, boffs)
    vmem = pltpu.MemorySpace.VMEM

    bytes_accessed = (x.size * 4 + y.size * 4 + w_slab_np.size * 2 +
                      b_slab_np.size * 4 + 3 * batch * OUT_LANES * 4)
    flops = int(2 * batch * sum(m.shape[0] * m.shape[1] for m in mats.values()))

    pallas_fn = pl.pallas_call(
        kernel,
        out_shape=jax.ShapeDtypeStruct((3, batch, OUT_LANES), jnp.float32),
        in_specs=[pl.BlockSpec(memory_space=vmem)] * 4,
        out_specs=pl.BlockSpec(memory_space=vmem),
        cost_estimate=pl.CostEstimate(flops=flops, transcendentals=256,
                                      bytes_accessed=int(bytes_accessed)),
    )

    @jax.jit
    def forward(x_in, y_in):
        x2d = x_in.reshape(x_in.shape[0], -1).astype(jnp.float32)   # NCL (C=1) -> [B, L]
        out = pallas_fn(x2d, y_in.astype(jnp.float32), w_slab, b_slab)
        enc = out[0, :, 0:n_enc]
        code = out[1, :, 0:n_enc]
        dec = out[2, :, 0:conv_shape]                               # == dec.view(B, -1)
        return enc, code, dec

    return forward, (jnp.asarray(x), jnp.asarray(y))


if __name__ == "__main__":
    BATCH = 2
    forward, (x, y) = build_cadfnn(batch=BATCH, conv_shape=16, n_enc=4, num_params=2)
    enc, code, dec = forward(x, y)
    jax.block_until_ready((enc, code, dec))
    assert enc.shape == (BATCH, 4) and code.shape == (BATCH, 4) and dec.shape == (BATCH, 16)
    assert np.all(np.isfinite(np.asarray(enc)))
    assert np.all(np.isfinite(np.asarray(code)))
    assert np.all(np.isfinite(np.asarray(dec)))
    print("KERNEL_OK")
</pallas_src>

<mosaic_0001>
module attributes {stable_mosaic.version = 11 : i64} {
  func.func @kernel(%arg0: memref<2x16xf32, #tpu.memory_space<vmem>>, %arg1: memref<2x2xf32, #tpu.memory_space<vmem>>, %arg2: memref<816x256xbf16, #tpu.memory_space<vmem>>, %arg3: memref<1x1792xf32, #tpu.memory_space<vmem>>, %arg4: memref<3x2x128xf32, #tpu.memory_space<vmem>>) attributes {dimension_semantics = [], scalar_prefetch = 0 : i64, scratch_operands = 0 : i64, tpu.core_type = #tpu.core_type<tc>} {
    %c0 = arith.constant 0 : index
    %c0_0 = arith.constant 0 : index
    %0 = vector.load %arg0[%c0, %c0_0] : memref<2x16xf32, #tpu.memory_space<vmem>>, vector<2x16xf32>
    %cst = arith.constant dense<0.000000e+00> : vector<2xf32>
    %1 = vector.multi_reduction <add>, %0, %cst [1] : vector<2x16xf32> to vector<2xf32>
    %2 = vector.shape_cast %1 : vector<2xf32> to vector<2x1xf32>
    %cst_1 = arith.constant 1.600000e+01 : f32
    %3 = vector.broadcast %cst_1 : f32 to vector<2x1xf32>
    %4 = arith.divf %2, %3 : vector<2x1xf32>
    %5 = vector.broadcast %4 : vector<2x1xf32> to vector<2x16xf32>
    %6 = arith.subf %0, %5 : vector<2x16xf32>
    %7 = arith.mulf %6, %6 : vector<2x16xf32>
    %cst_2 = arith.constant dense<0.000000e+00> : vector<2xf32>
    %8 = vector.multi_reduction <add>, %7, %cst_2 [1] : vector<2x16xf32> to vector<2xf32>
    %9 = vector.shape_cast %8 : vector<2xf32> to vector<2x1xf32>
    %cst_3 = arith.constant 1.600000e+01 : f32
    %10 = vector.broadcast %cst_3 : f32 to vector<2x1xf32>
    %11 = arith.divf %9, %10 : vector<2x1xf32>
    %cst_4 = arith.constant 9.99999974E-6 : f32
    %12 = vector.broadcast %cst_4 : f32 to vector<2x1xf32>
    %13 = arith.addf %11, %12 : vector<2x1xf32>
    %14 = math.rsqrt %13 : vector<2x1xf32>
    %15 = vector.broadcast %14 : vector<2x1xf32> to vector<2x16xf32>
    %16 = arith.mulf %6, %15 : vector<2x16xf32>
    %17 = arith.truncf %16 : vector<2x16xf32> to vector<2x16xbf16>
    %c736 = arith.constant 736 : index
    %c128 = arith.constant 128 : index
    %18 = vector.load %arg2[%c736, %c128] : memref<816x256xbf16, #tpu.memory_space<vmem>>, vector<16x128xbf16>
    %cst_5 = arith.constant dense<0.000000e+00> : vector<2x128xf32>
    %19 = tpu.matmul %17, %18, %cst_5 {dimension_numbers = #tpu.dot_dimension_numbers<[1], [0], [0], [1], [0, 0, 1, 1], [], []>} : vector<2x16xbf16>, vector<16x128xbf16>, vector<2x128xf32> -> vector<2x128xf32>
    %c0_6 = arith.constant 0 : index
    %c0_7 = arith.constant 0 : index
    %20 = vector.load %arg3[%c0_6, %c0_7] : memref<1x1792xf32, #tpu.memory_space<vmem>>, vector<1x128xf32>
    %21 = vector.broadcast %20 : vector<1x128xf32> to vector<2x128xf32>
    %22 = arith.addf %19, %21 : vector<2x128xf32>
    %cst_8 = arith.constant 0.000000e+00 : f32
    %23 = vector.broadcast %cst_8 : f32 to vector<2x128xf32>
    %24 = arith.cmpf oge, %22, %23 : vector<2x128xf32>
    %cst_9 = arith.constant 0.00999999977 : f32
    %25 = vector.broadcast %cst_9 : f32 to vector<2x128xf32>
    %26 = arith.mulf %25, %22 : vector<2x128xf32>
    %27 = arith.select %24, %22, %26 : vector<2x128xi1>, vector<2x128xf32>
    %cst_10 = arith.constant dense<0.000000e+00> : vector<128xf32>
    %28 = vector.multi_reduction <add>, %27, %cst_10 [0] : vector<2x128xf32> to vector<128xf32>
    %29 = vector.shape_cast %28 : vector<128xf32> to vector<1x128xf32>
    %cst_11 = arith.constant 2.000000e+00 : f32
    %30 = vector.broadcast %cst_11 : f32 to vector<1x128xf32>
    %31 = arith.divf %29, %30 : vector<1x128xf32>
    %32 = arith.mulf %27, %27 : vector<2x128xf32>
    %cst_12 = arith.constant dense<0.000000e+00> : vector<128xf32>
    %33 = vector.multi_reduction <add>, %32, %cst_12 [0] : vector<2x128xf32> to vector<128xf32>
    %34 = vector.shape_cast %33 : vector<128xf32> to vector<1x128xf32>
    %cst_13 = arith.constant 2.000000e+00 : f32
    %35 = vector.broadcast %cst_13 : f32 to vector<1x128xf32>
    %36 = arith.divf %34, %35 : vector<1x128xf32>
    %37 = tpu.iota {dimensions = array<i32: 0>} : vector<2x128xi32>
    %c0_i32 = arith.constant 0 : i32
    %38 = vector.broadcast %c0_i32 : i32 to vector<2x128xi32>
    %39 = arith.cmpi eq, %37, %38 : vector<2x128xi32>
    %40 = vector.shape_cast %31 : vector<1x128xf32> to vector<1x128xf32>
    %41 = vector.broadcast %40 : vector<1x128xf32> to vector<2x128xf32>
    %42 = vector.shape_cast %36 : vector<1x128xf32> to vector<1x128xf32>
    %43 = vector.broadcast %42 : vector<1x128xf32> to vector<2x128xf32>
    %44 = arith.select %39, %41, %43 : vector<2x128xi1>, vector<2x128xf32>
    %45 = arith.truncf %44 : vector<2x128xf32> to vector<2x128xbf16>
    %c416 = arith.constant 416 : index
    %c128_14 = arith.constant 128 : index
    %46 = vector.load %arg2[%c416, %c128_14] : memref<816x256xbf16, #tpu.memory_space<vmem>>, vector<128x16xbf16>
    %cst_15 = arith.constant dense<0.000000e+00> : vector<2x16xf32>
    %47 = tpu.matmul %45, %46, %cst_15 {dimension_numbers = #tpu.dot_dimension_numbers<[1], [0], [0], [1], [0, 0, 1, 1], [], []>} : vector<2x128xbf16>, vector<128x16xbf16>, vector<2x16xf32> -> vector<2x16xf32>
    %48 = vector.extract_strided_slice %47 {offsets = [0, 0], sizes = [1, 16], strides = [1, 1]} : vector<2x16xf32> to vector<1x16xf32>
    %49 = vector.extract_strided_slice %47 {offsets = [1, 0], sizes = [1, 16], strides = [1, 1]} : vector<2x16xf32> to vector<1x16xf32>
    %50 = arith.mulf %48, %48 : vector<1x16xf32>
    %51 = arith.subf %49, %50 : vector<1x16xf32>
    %cst_16 = arith.constant 0.000000e+00 : f32
    %52 = vector.broadcast %cst_16 : f32 to vector<1x16xf32>
    %53 = arith.maximumf %51, %52 : vector<1x16xf32>
    %cst_17 = arith.constant 9.99999974E-6 : f32
    %54 = vector.broadcast %cst_17 : f32 to vector<1x16xf32>
    %55 = arith.addf %53, %54 : vector<1x16xf32>
    %56 = math.rsqrt %55 : vector<1x16xf32>
    %57 = tpu.iota {dimensions = array<i32: 0>} : vector<2x16xi32>
    %c0_i32_18 = arith.constant 0 : i32
    %58 = vector.broadcast %c0_i32_18 : i32 to vector<2x16xi32>
    %59 = arith.cmpi eq, %57, %58 : vector<2x16xi32>
    %60 = vector.shape_cast %48 : vector<1x16xf32> to vector<1x16xf32>
    %61 = vector.broadcast %60 : vector<1x16xf32> to vector<2x16xf32>
    %62 = vector.shape_cast %56 : vector<1x16xf32> to vector<1x16xf32>
    %63 = vector.broadcast %62 : vector<1x16xf32> to vector<2x16xf32>
    %64 = arith.select %59, %61, %63 : vector<2x16xi1>, vector<2x16xf32>
    %65 = arith.truncf %64 : vector<2x16xf32> to vector<2x16xbf16>
    %c720 = arith.constant 720 : index
    %c128_19 = arith.constant 128 : index
    %66 = vector.load %arg2[%c720, %c128_19] : memref<816x256xbf16, #tpu.memory_space<vmem>>, vector<16x128xbf16>
    %cst_20 = arith.constant dense<0.000000e+00> : vector<2x128xf32>
    %67 = tpu.matmul %65, %66, %cst_20 {dimension_numbers = #tpu.dot_dimension_numbers<[1], [0], [0], [1], [0, 0, 1, 1], [], []>} : vector<2x16xbf16>, vector<16x128xbf16>, vector<2x128xf32> -> vector<2x128xf32>
    %68 = vector.extract_strided_slice %67 {offsets = [0, 0], sizes = [1, 128], strides = [1, 1]} : vector<2x128xf32> to vector<1x128xf32>
    %69 = vector.broadcast %68 : vector<1x128xf32> to vector<2x128xf32>
    %70 = arith.subf %27, %69 : vector<2x128xf32>
    %71 = vector.extract_strided_slice %67 {offsets = [1, 0], sizes = [1, 128], strides = [1, 1]} : vector<2x128xf32> to vector<1x128xf32>
    %72 = vector.broadcast %71 : vector<1x128xf32> to vector<2x128xf32>
    %73 = arith.mulf %70, %72 : vector<2x128xf32>
    %74 = arith.truncf %73 : vector<2x128xf32> to vector<2x128xbf16>
    %c32 = arith.constant 32 : index
    %c0_21 = arith.constant 0 : index
    %75 = vector.load %arg2[%c32, %c0_21] : memref<816x256xbf16, #tpu.memory_space<vmem>>, vector<128x256xbf16>
    %cst_22 = arith.constant dense<0.000000e+00> : vector<2x256xf32>
    %76 = tpu.matmul %74, %75, %cst_22 {dimension_numbers = #tpu.dot_dimension_numbers<[1], [0], [0], [1], [0, 0, 1, 1], [], []>} : vector<2x128xbf16>, vector<128x256xbf16>, vector<2x256xf32> -> vector<2x256xf32>
    %c0_23 = arith.constant 0 : index
    %c128_24 = arith.constant 128 : index
    %77 = vector.load %arg3[%c0_23, %c128_24] : memref<1x1792xf32, #tpu.memory_space<vmem>>, vector<1x256xf32>
    %78 = vector.broadcast %77 : vector<1x256xf32> to vector<2x256xf32>
    %79 = arith.addf %76, %78 : vector<2x256xf32>
    %cst_25 = arith.constant 0.000000e+00 : f32
    %80 = vector.broadcast %cst_25 : f32 to vector<2x256xf32>
    %81 = arith.cmpf oge, %79, %80 : vector<2x256xf32>
    %cst_26 = arith.constant 0.00999999977 : f32
    %82 = vector.broadcast %cst_26 : f32 to vector<2x256xf32>
    %83 = arith.mulf %82, %79 : vector<2x256xf32>
    %84 = arith.select %81, %79, %83 : vector<2x256xi1>, vector<2x256xf32>
    %cst_27 = arith.constant dense<0.000000e+00> : vector<256xf32>
    %85 = vector.multi_reduction <add>, %84, %cst_27 [0] : vector<2x256xf32> to vector<256xf32>
    %86 = vector.shape_cast %85 : vector<256xf32> to vector<1x256xf32>
    %cst_28 = arith.constant 2.000000e+00 : f32
    %87 = vector.broadcast %cst_28 : f32 to vector<1x256xf32>
    %88 = arith.divf %86, %87 : vector<1x256xf32>
    %89 = arith.mulf %84, %84 : vector<2x256xf32>
    %cst_29 = arith.constant dense<0.000000e+00> : vector<256xf32>
    %90 = vector.multi_reduction <add>, %89, %cst_29 [0] : vector<2x256xf32> to vector<256xf32>
    %91 = vector.shape_cast %90 : vector<256xf32> to vector<1x256xf32>
    %cst_30 = arith.constant 2.000000e+00 : f32
    %92 = vector.broadcast %cst_30 : f32 to vector<1x256xf32>
    %93 = arith.divf %91, %92 : vector<1x256xf32>
    %94 = tpu.iota {dimensions = array<i32: 0>} : vector<2x256xi32>
    %c0_i32_31 = arith.constant 0 : i32
    %95 = vector.broadcast %c0_i32_31 : i32 to vector<2x256xi32>
    %96 = arith.cmpi eq, %94, %95 : vector<2x256xi32>
    %97 = vector.shape_cast %88 : vector<1x256xf32> to vector<1x256xf32>
    %98 = vector.broadcast %97 : vector<1x256xf32> to vector<2x256xf32>
    %99 = vector.shape_cast %93 : vector<1x256xf32> to vector<1x256xf32>
    %100 = vector.broadcast %99 : vector<1x256xf32> to vector<2x256xf32>
    %101 = arith.select %96, %98, %100 : vector<2x256xi1>, vector<2x256xf32>
    %102 = arith.truncf %101 : vector<2x256xf32> to vector<2x256xbf16>
    %c160 = arith.constant 160 : index
    %c0_32 = arith.constant 0 : index
    %103 = vector.load %arg2[%c160, %c0_32] : memref<816x256xbf16, #tpu.memory_space<vmem>>, vector<256x16xbf16>
    %cst_33 = arith.constant dense<0.000000e+00> : vector<2x16xf32>
    %104 = tpu.matmul %102, %103, %cst_33 {dimension_numbers = #tpu.dot_dimension_numbers<[1], [0], [0], [1], [0, 0, 1, 1], [], []>} : vector<2x256xbf16>, vector<256x16xbf16>, vector<2x16xf32> -> vector<2x16xf32>
    %105 = vector.extract_strided_slice %104 {offsets = [0, 0], sizes = [1, 16], strides = [1, 1]} : vector<2x16xf32> to vector<1x16xf32>
    %106 = vector.extract_strided_slice %104 {offsets = [1, 0], sizes = [1, 16], strides = [1, 1]} : vector<2x16xf32> to vector<1x16xf32>
    %107 = arith.mulf %105, %105 : vector<1x16xf32>
    %108 = arith.subf %106, %107 : vector<1x16xf32>
    %cst_34 = arith.constant 0.000000e+00 : f32
    %109 = vector.broadcast %cst_34 : f32 to vector<1x16xf32>
    %110 = arith.maximumf %108, %109 : vector<1x16xf32>
    %cst_35 = arith.constant 9.99999974E-6 : f32
    %111 = vector.broadcast %cst_35 : f32 to vector<1x16xf32>
    %112 = arith.addf %110, %111 : vector<1x16xf32>
    %113 = math.rsqrt %112 : vector<1x16xf32>
    %114 = tpu.iota {dimensions = array<i32: 0>} : vector<2x16xi32>
    %c0_i32_36 = arith.constant 0 : i32
    %115 = vector.broadcast %c0_i32_36 : i32 to vector<2x16xi32>
    %116 = arith.cmpi eq, %114, %115 : vector<2x16xi32>
    %117 = vector.shape_cast %105 : vector<1x16xf32> to vector<1x16xf32>
    %118 = vector.broadcast %117 : vector<1x16xf32> to vector<2x16xf32>
    %119 = vector.shape_cast %113 : vector<1x16xf32> to vector<1x16xf32>
    %120 = vector.broadcast %119 : vector<1x16xf32> to vector<2x16xf32>
    %121 = arith.select %116, %118, %120 : vector<2x16xi1>, vector<2x16xf32>
    %122 = arith.truncf %121 : vector<2x16xf32> to vector<2x16xbf16>
    %c0_37 = arith.constant 0 : index
    %c0_38 = arith.constant 0 : index
    %123 = vector.load %arg2[%c0_37, %c0_38] : memref<816x256xbf16, #tpu.memory_space<vmem>>, vector<16x256xbf16>
    %cst_39 = arith.constant dense<0.000000e+00> : vector<2x256xf32>
    %124 = tpu.matmul %122, %123, %cst_39 {dimension_numbers = #tpu.dot_dimension_numbers<[1], [0], [0], [1], [0, 0, 1, 1], [], []>} : vector<2x16xbf16>, vector<16x256xbf16>, vector<2x256xf32> -> vector<2x256xf32>
    %125 = vector.extract_strided_slice %124 {offsets = [0, 0], sizes = [1, 256], strides = [1, 1]} : vector<2x256xf32> to vector<1x256xf32>
    %126 = vector.broadcast %125 : vector<1x256xf32> to vector<2x256xf32>
    %127 = arith.subf %84, %126 : vector<2x256xf32>
    %128 = vector.extract_strided_slice %124 {offsets = [1, 0], sizes = [1, 256], strides = [1, 1]} : vector<2x256xf32> to vector<1x256xf32>
    %129 = vector.broadcast %128 : vector<1x256xf32> to vector<2x256xf32>
    %130 = arith.mulf %127, %129 : vector<2x256xf32>
    %131 = arith.truncf %130 : vector<2x256xf32> to vector<2x256xbf16>
    %c416_40 = arith.constant 416 : index
    %c0_41 = arith.constant 0 : index
    %132 = vector.load %arg2[%c416_40, %c0_41] : memref<816x256xbf16, #tpu.memory_space<vmem>>, vector<256x16xbf16>
    %cst_42 = arith.constant dense<0.000000e+00> : vector<2x16xf32>
    %133 = tpu.matmul %131, %132, %cst_42 {dimension_numbers = #tpu.dot_dimension_numbers<[1], [0], [0], [1], [0, 0, 1, 1], [], []>} : vector<2x256xbf16>, vector<256x16xbf16>, vector<2x16xf32> -> vector<2x16xf32>
    %c0_43 = arith.constant 0 : index
    %c384 = arith.constant 384 : index
    %134 = vector.load %arg3[%c0_43, %c384] : memref<1x1792xf32, #tpu.memory_space<vmem>>, vector<1x16xf32>
    %135 = vector.broadcast %134 : vector<1x16xf32> to vector<2x16xf32>
    %136 = arith.addf %133, %135 : vector<2x16xf32>
    %cst_44 = arith.constant 0.000000e+00 : f32
    %137 = vector.broadcast %cst_44 : f32 to vector<2x16xf32>
    %138 = arith.cmpf oge, %136, %137 : vector<2x16xf32>
    %cst_45 = arith.constant 0.00999999977 : f32
    %139 = vector.broadcast %cst_45 : f32 to vector<2x16xf32>
    %140 = arith.mulf %139, %136 : vector<2x16xf32>
    %141 = arith.select %138, %136, %140 : vector<2x16xi1>, vector<2x16xf32>
    %cst_46 = arith.constant dense<0.000000e+00> : vector<16xf32>
    %142 = vector.multi_reduction <add>, %141, %cst_46 [0] : vector<2x16xf32> to vector<16xf32>
    %143 = vector.shape_cast %142 : vector<16xf32> to vector<1x16xf32>
    %cst_47 = arith.constant 2.000000e+00 : f32
    %144 = vector.broadcast %cst_47 : f32 to vector<1x16xf32>
    %145 = arith.divf %143, %144 : vector<1x16xf32>
    %146 = vector.broadcast %145 : vector<1x16xf32> to vector<2x16xf32>
    %147 = arith.subf %141, %146 : vector<2x16xf32>
    %148 = arith.mulf %147, %147 : vector<2x16xf32>
    %cst_48 = arith.constant dense<0.000000e+00> : vector<16xf32>
    %149 = vector.multi_reduction <add>, %148, %cst_48 [0] : vector<2x16xf32> to vector<16xf32>
    %150 = vector.shape_cast %149 : vector<16xf32> to vector<1x16xf32>
    %cst_49 = arith.constant 2.000000e+00 : f32
    %151 = vector.broadcast %cst_49 : f32 to vector<1x16xf32>
    %152 = arith.divf %150, %151 : vector<1x16xf32>
    %cst_50 = arith.constant 9.99999974E-6 : f32
    %153 = vector.broadcast %cst_50 : f32 to vector<1x16xf32>
    %154 = arith.addf %152, %153 : vector<1x16xf32>
    %155 = math.rsqrt %154 : vector<1x16xf32>
    %156 = vector.broadcast %155 : vector<1x16xf32> to vector<2x16xf32>
    %157 = arith.mulf %147, %156 : vector<2x16xf32>
    %158 = arith.truncf %157 : vector<2x16xf32> to vector<2x16xbf16>
    %c752 = arith.constant 752 : index
    %c128_51 = arith.constant 128 : index
    %159 = vector.load %arg2[%c752, %c128_51] : memref<816x256xbf16, #tpu.memory_space<vmem>>, vector<16x128xbf16>
    %cst_52 = arith.constant dense<0.000000e+00> : vector<2x128xf32>
    %160 = tpu.matmul %158, %159, %cst_52 {dimension_numbers = #tpu.dot_dimension_numbers<[1], [0], [0], [1], [0, 0, 1, 1], [], []>} : vector<2x16xbf16>, vector<16x128xbf16>, vector<2x128xf32> -> vector<2x128xf32>
    %c0_53 = arith.constant 0 : index
    %c512 = arith.constant 512 : index
    %161 = vector.load %arg3[%c0_53, %c512] : memref<1x1792xf32, #tpu.memory_space<vmem>>, vector<1x128xf32>
    %162 = vector.broadcast %161 : vector<1x128xf32> to vector<2x128xf32>
    %163 = arith.addf %160, %162 : vector<2x128xf32>
    %c0_54 = arith.constant 0 : index
    %c0_55 = arith.constant 0 : index
    %164 = vector.load %arg1[%c0_54, %c0_55] : memref<2x2xf32, #tpu.memory_space<vmem>>, vector<2x2xf32>
    %165 = arith.truncf %164 : vector<2x2xf32> to vector<2x2xbf16>
    %c800 = arith.constant 800 : index
    %c0_56 = arith.constant 0 : index
    %166 = vector.load %arg2[%c800, %c0_56] : memref<816x256xbf16, #tpu.memory_space<vmem>>, vector<2x12xbf16>
    %cst_57 = arith.constant dense<0.000000e+00> : vector<2x12xf32>
    %167 = tpu.matmul %165, %166, %cst_57 {dimension_numbers = #tpu.dot_dimension_numbers<[1], [0], [0], [1], [0, 0, 1, 1], [], []>} : vector<2x2xbf16>, vector<2x12xbf16>, vector<2x12xf32> -> vector<2x12xf32>
    %c0_58 = arith.constant 0 : index
    %c640 = arith.constant 640 : index
    %168 = vector.load %arg3[%c0_58, %c640] : memref<1x1792xf32, #tpu.memory_space<vmem>>, vector<1x12xf32>
    %169 = vector.broadcast %168 : vector<1x12xf32> to vector<2x12xf32>
    %170 = arith.addf %167, %169 : vector<2x12xf32>
    %cst_59 = arith.constant 0.000000e+00 : f32
    %171 = vector.broadcast %cst_59 : f32 to vector<2x12xf32>
    %172 = arith.cmpf oge, %170, %171 : vector<2x12xf32>
    %cst_60 = arith.constant 0.00999999977 : f32
    %173 = vector.broadcast %cst_60 : f32 to vector<2x12xf32>
    %174 = arith.mulf %173, %170 : vector<2x12xf32>
    %175 = arith.select %172, %170, %174 : vector<2x12xi1>, vector<2x12xf32>
    %cst_61 = arith.constant dense<0.000000e+00> : vector<12xf32>
    %176 = vector.multi_reduction <add>, %175, %cst_61 [0] : vector<2x12xf32> to vector<12xf32>
    %177 = vector.shape_cast %176 : vector<12xf32> to vector<1x12xf32>
    %cst_62 = arith.constant 2.000000e+00 : f32
    %178 = vector.broadcast %cst_62 : f32 to vector<1x12xf32>
    %179 = arith.divf %177, %178 : vector<1x12xf32>
    %180 = vector.broadcast %179 : vector<1x12xf32> to vector<2x12xf32>
    %181 = arith.subf %175, %180 : vector<2x12xf32>
    %182 = arith.mulf %181, %181 : vector<2x12xf32>
    %cst_63 = arith.constant dense<0.000000e+00> : vector<12xf32>
    %183 = vector.multi_reduction <add>, %182, %cst_63 [0] : vector<2x12xf32> to vector<12xf32>
    %184 = vector.shape_cast %183 : vector<12xf32> to vector<1x12xf32>
    %cst_64 = arith.constant 2.000000e+00 : f32
    %185 = vector.broadcast %cst_64 : f32 to vector<1x12xf32>
    %186 = arith.divf %184, %185 : vector<1x12xf32>
    %cst_65 = arith.constant 9.99999974E-6 : f32
    %187 = vector.broadcast %cst_65 : f32 to vector<1x12xf32>
    %188 = arith.addf %186, %187 : vector<1x12xf32>
    %189 = math.rsqrt %188 : vector<1x12xf32>
    %190 = vector.broadcast %189 : vector<1x12xf32> to vector<2x12xf32>
    %191 = arith.mulf %181, %190 : vector<2x12xf32>
    %192 = arith.truncf %191 : vector<2x12xf32> to vector<2x12xbf16>
    %c768 = arith.constant 768 : index
    %c128_66 = arith.constant 128 : index
    %193 = vector.load %arg2[%c768, %c128_66] : memref<816x256xbf16, #tpu.memory_space<vmem>>, vector<12x36xbf16>
    %cst_67 = arith.constant dense<0.000000e+00> : vector<2x36xf32>
    %194 = tpu.matmul %192, %193, %cst_67 {dimension_numbers = #tpu.dot_dimension_numbers<[1], [0], [0], [1], [0, 0, 1, 1], [], []>} : vector<2x12xbf16>, vector<12x36xbf16>, vector<2x36xf32> -> vector<2x36xf32>
    %c0_68 = arith.constant 0 : index
    %c768_69 = arith.constant 768 : index
    %195 = vector.load %arg3[%c0_68, %c768_69] : memref<1x1792xf32, #tpu.memory_space<vmem>>, vector<1x36xf32>
    %196 = vector.broadcast %195 : vector<1x36xf32> to vector<2x36xf32>
    %197 = arith.addf %194, %196 : vector<2x36xf32>
    %cst_70 = arith.constant 0.000000e+00 : f32
    %198 = vector.broadcast %cst_70 : f32 to vector<2x36xf32>
    %199 = arith.cmpf oge, %197, %198 : vector<2x36xf32>
    %cst_71 = arith.constant 0.00999999977 : f32
    %200 = vector.broadcast %cst_71 : f32 to vector<2x36xf32>
    %201 = arith.mulf %200, %197 : vector<2x36xf32>
    %202 = arith.select %199, %197, %201 : vector<2x36xi1>, vector<2x36xf32>
    %cst_72 = arith.constant dense<0.000000e+00> : vector<36xf32>
    %203 = vector.multi_reduction <add>, %202, %cst_72 [0] : vector<2x36xf32> to vector<36xf32>
    %204 = vector.shape_cast %203 : vector<36xf32> to vector<1x36xf32>
    %cst_73 = arith.constant 2.000000e+00 : f32
    %205 = vector.broadcast %cst_73 : f32 to vector<1x36xf32>
    %206 = arith.divf %204, %205 : vector<1x36xf32>
    %207 = vector.broadcast %206 : vector<1x36xf32> to vector<2x36xf32>
    %208 = arith.subf %202, %207 : vector<2x36xf32>
    %209 = arith.mulf %208, %208 : vector<2x36xf32>
    %cst_74 = arith.constant dense<0.000000e+00> : vector<36xf32>
    %210 = vector.multi_reduction <add>, %209, %cst_74 [0] : vector<2x36xf32> to vector<36xf32>
    %211 = vector.shape_cast %210 : vector<36xf32> to vector<1x36xf32>
    %cst_75 = arith.constant 2.000000e+00 : f32
    %212 = vector.broadcast %cst_75 : f32 to vector<1x36xf32>
    %213 = arith.divf %211, %212 : vector<1x36xf32>
    %cst_76 = arith.constant 9.99999974E-6 : f32
    %214 = vector.broadcast %cst_76 : f32 to vector<1x36xf32>
    %215 = arith.addf %213, %214 : vector<1x36xf32>
    %216 = math.rsqrt %215 : vector<1x36xf32>
    %217 = vector.broadcast %216 : vector<1x36xf32> to vector<2x36xf32>
    %218 = arith.mulf %208, %217 : vector<2x36xf32>
    %219 = arith.truncf %218 : vector<2x36xf32> to vector<2x36xbf16>
    %c672 = arith.constant 672 : index
    %c128_77 = arith.constant 128 : index
    %220 = vector.load %arg2[%c672, %c128_77] : memref<816x256xbf16, #tpu.memory_space<vmem>>, vector<36x12xbf16>
    %cst_78 = arith.constant dense<0.000000e+00> : vector<2x12xf32>
    %221 = tpu.matmul %219, %220, %cst_78 {dimension_numbers = #tpu.dot_dimension_numbers<[1], [0], [0], [1], [0, 0, 1, 1], [], []>} : vector<2x36xbf16>, vector<36x12xbf16>, vector<2x12xf32> -> vector<2x12xf32>
    %c0_79 = arith.constant 0 : index
    %c896 = arith.constant 896 : index
    %222 = vector.load %arg3[%c0_79, %c896] : memref<1x1792xf32, #tpu.memory_space<vmem>>, vector<1x12xf32>
    %223 = vector.broadcast %222 : vector<1x12xf32> to vector<2x12xf32>
    %224 = arith.addf %221, %223 : vector<2x12xf32>
    %cst_80 = arith.constant 0.000000e+00 : f32
    %225 = vector.broadcast %cst_80 : f32 to vector<2x12xf32>
    %226 = arith.cmpf oge, %224, %225 : vector<2x12xf32>
    %cst_81 = arith.constant 0.00999999977 : f32
    %227 = vector.broadcast %cst_81 : f32 to vector<2x12xf32>
    %228 = arith.mulf %227, %224 : vector<2x12xf32>
    %229 = arith.select %226, %224, %228 : vector<2x12xi1>, vector<2x12xf32>
    %cst_82 = arith.constant dense<0.000000e+00> : vector<12xf32>
    %230 = vector.multi_reduction <add>, %229, %cst_82 [0] : vector<2x12xf32> to vector<12xf32>
    %231 = vector.shape_cast %230 : vector<12xf32> to vector<1x12xf32>
    %cst_83 = arith.constant 2.000000e+00 : f32
    %232 = vector.broadcast %cst_83 : f32 to vector<1x12xf32>
    %233 = arith.divf %231, %232 : vector<1x12xf32>
    %234 = vector.broadcast %233 : vector<1x12xf32> to vector<2x12xf32>
    %235 = arith.subf %229, %234 : vector<2x12xf32>
    %236 = arith.mulf %235, %235 : vector<2x12xf32>
    %cst_84 = arith.constant dense<0.000000e+00> : vector<12xf32>
    %237 = vector.multi_reduction <add>, %236, %cst_84 [0] : vector<2x12xf32> to vector<12xf32>
    %238 = vector.shape_cast %237 : vector<12xf32> to vector<1x12xf32>
    %cst_85 = arith.constant 2.000000e+00 : f32
    %239 = vector.broadcast %cst_85 : f32 to vector<1x12xf32>
    %240 = arith.divf %238, %239 : vector<1x12xf32>
    %cst_86 = arith.constant 9.99999974E-6 : f32
    %241 = vector.broadcast %cst_86 : f32 to vector<1x12xf32>
    %242 = arith.addf %240, %241 : vector<1x12xf32>
    %243 = math.rsqrt %242 : vector<1x12xf32>
    %244 = vector.broadcast %243 : vector<1x12xf32> to vector<2x12xf32>
    %245 = arith.mulf %235, %244 : vector<2x12xf32>
    %246 = arith.truncf %245 : vector<2x12xf32> to vector<2x12xbf16>
    %c784 = arith.constant 784 : index
    %c128_87 = arith.constant 128 : index
    %247 = vector.load %arg2[%c784, %c128_87] : memref<816x256xbf16, #tpu.memory_space<vmem>>, vector<12x128xbf16>
    %cst_88 = arith.constant dense<0.000000e+00> : vector<2x128xf32>
    %248 = tpu.matmul %246, %247, %cst_88 {dimension_numbers = #tpu.dot_dimension_numbers<[1], [0], [0], [1], [0, 0, 1, 1], [], []>} : vector<2x12xbf16>, vector<12x128xbf16>, vector<2x128xf32> -> vector<2x128xf32>
    %c0_89 = arith.constant 0 : index
    %c1024 = arith.constant 1024 : index
    %249 = vector.load %arg3[%c0_89, %c1024] : memref<1x1792xf32, #tpu.memory_space<vmem>>, vector<1x128xf32>
    %250 = vector.broadcast %249 : vector<1x128xf32> to vector<2x128xf32>
    %251 = arith.addf %248, %250 : vector<2x128xf32>
    %252 = arith.truncf %251 : vector<2x128xf32> to vector<2x128xbf16>
    %c672_90 = arith.constant 672 : index
    %c0_91 = arith.constant 0 : index
    %253 = vector.load %arg2[%c672_90, %c0_91] : memref<816x256xbf16, #tpu.memory_space<vmem>>, vector<128x16xbf16>
    %cst_92 = arith.constant dense<0.000000e+00> : vector<2x16xf32>
    %254 = tpu.matmul %252, %253, %cst_92 {dimension_numbers = #tpu.dot_dimension_numbers<[1], [0], [0], [1], [0, 0, 1, 1], [], []>} : vector<2x128xbf16>, vector<128x16xbf16>, vector<2x16xf32> -> vector<2x16xf32>
    %c0_93 = arith.constant 0 : index
    %c1152 = arith.constant 1152 : index
    %255 = vector.load %arg3[%c0_93, %c1152] : memref<1x1792xf32, #tpu.memory_space<vmem>>, vector<1x16xf32>
    %256 = vector.broadcast %255 : vector<1x16xf32> to vector<2x16xf32>
    %257 = arith.addf %254, %256 : vector<2x16xf32>
    %cst_94 = arith.constant 0.000000e+00 : f32
    %258 = vector.broadcast %cst_94 : f32 to vector<2x16xf32>
    %259 = arith.cmpf oge, %257, %258 : vector<2x16xf32>
    %cst_95 = arith.constant 0.00999999977 : f32
    %260 = vector.broadcast %cst_95 : f32 to vector<2x16xf32>
    %261 = arith.mulf %260, %257 : vector<2x16xf32>
    %262 = arith.select %259, %257, %261 : vector<2x16xi1>, vector<2x16xf32>
    %cst_96 = arith.constant dense<0.000000e+00> : vector<16xf32>
    %263 = vector.multi_reduction <add>, %262, %cst_96 [0] : vector<2x16xf32> to vector<16xf32>
    %264 = vector.shape_cast %263 : vector<16xf32> to vector<1x16xf32>
    %cst_97 = arith.constant 2.000000e+00 : f32
    %265 = vector.broadcast %cst_97 : f32 to vector<1x16xf32>
    %266 = arith.divf %264, %265 : vector<1x16xf32>
    %267 = vector.broadcast %266 : vector<1x16xf32> to vector<2x16xf32>
    %268 = arith.subf %262, %267 : vector<2x16xf32>
    %269 = arith.mulf %268, %268 : vector<2x16xf32>
    %cst_98 = arith.constant dense<0.000000e+00> : vector<16xf32>
    %270 = vector.multi_reduction <add>, %269, %cst_98 [0] : vector<2x16xf32> to vector<16xf32>
    %271 = vector.shape_cast %270 : vector<16xf32> to vector<1x16xf32>
    %cst_99 = arith.constant 2.000000e+00 : f32
    %272 = vector.broadcast %cst_99 : f32 to vector<1x16xf32>
    %273 = arith.divf %271, %272 : vector<1x16xf32>
    %cst_100 = arith.constant 9.99999974E-6 : f32
    %274 = vector.broadcast %cst_100 : f32 to vector<1x16xf32>
    %275 = arith.addf %273, %274 : vector<1x16xf32>
    %276 = math.rsqrt %275 : vector<1x16xf32>
    %277 = vector.broadcast %276 : vector<1x16xf32> to vector<2x16xf32>
    %278 = arith.mulf %268, %277 : vector<2x16xf32>
    %279 = arith.truncf %278 : vector<2x16xf32> to vector<2x16xbf16>
    %c16 = arith.constant 16 : index
    %c0_101 = arith.constant 0 : index
    %280 = vector.load %arg2[%c16, %c0_101] : memref<816x256xbf16, #tpu.memory_space<vmem>>, vector<16x256xbf16>
    %cst_102 = arith.constant dense<0.000000e+00> : vector<2x256xf32>
    %281 = tpu.matmul %279, %280, %cst_102 {dimension_numbers = #tpu.dot_dimension_numbers<[1], [0], [0], [1], [0, 0, 1, 1], [], []>} : vector<2x16xbf16>, vector<16x256xbf16>, vector<2x256xf32> -> vector<2x256xf32>
    %c0_103 = arith.constant 0 : index
    %c1280 = arith.constant 1280 : index
    %282 = vector.load %arg3[%c0_103, %c1280] : memref<1x1792xf32, #tpu.memory_space<vmem>>, vector<1x256xf32>
    %283 = vector.broadcast %282 : vector<1x256xf32> to vector<2x256xf32>
    %284 = arith.addf %281, %283 : vector<2x256xf32>
    %cst_104 = arith.constant 0.000000e+00 : f32
    %285 = vector.broadcast %cst_104 : f32 to vector<2x256xf32>
    %286 = arith.cmpf oge, %284, %285 : vector<2x256xf32>
    %cst_105 = arith.constant 0.00999999977 : f32
    %287 = vector.broadcast %cst_105 : f32 to vector<2x256xf32>
    %288 = arith.mulf %287, %284 : vector<2x256xf32>
    %289 = arith.select %286, %284, %288 : vector<2x256xi1>, vector<2x256xf32>
    %cst_106 = arith.constant dense<0.000000e+00> : vector<256xf32>
    %290 = vector.multi_reduction <add>, %289, %cst_106 [0] : vector<2x256xf32> to vector<256xf32>
    %291 = vector.shape_cast %290 : vector<256xf32> to vector<1x256xf32>
    %cst_107 = arith.constant 2.000000e+00 : f32
    %292 = vector.broadcast %cst_107 : f32 to vector<1x256xf32>
    %293 = arith.divf %291, %292 : vector<1x256xf32>
    %294 = arith.mulf %289, %289 : vector<2x256xf32>
    %cst_108 = arith.constant dense<0.000000e+00> : vector<256xf32>
    %295 = vector.multi_reduction <add>, %294, %cst_108 [0] : vector<2x256xf32> to vector<256xf32>
    %296 = vector.shape_cast %295 : vector<256xf32> to vector<1x256xf32>
    %cst_109 = arith.constant 2.000000e+00 : f32
    %297 = vector.broadcast %cst_109 : f32 to vector<1x256xf32>
    %298 = arith.divf %296, %297 : vector<1x256xf32>
    %299 = tpu.iota {dimensions = array<i32: 0>} : vector<2x256xi32>
    %c0_i32_110 = arith.constant 0 : i32
    %300 = vector.broadcast %c0_i32_110 : i32 to vector<2x256xi32>
    %301 = arith.cmpi eq, %299, %300 : vector<2x256xi32>
    %302 = vector.shape_cast %293 : vector<1x256xf32> to vector<1x256xf32>
    %303 = vector.broadcast %302 : vector<1x256xf32> to vector<2x256xf32>
    %304 = vector.shape_cast %298 : vector<1x256xf32> to vector<1x256xf32>
    %305 = vector.broadcast %304 : vector<1x256xf32> to vector<2x256xf32>
    %306 = arith.select %301, %303, %305 : vector<2x256xi1>, vector<2x256xf32>
    %307 = arith.truncf %306 : vector<2x256xf32> to vector<2x256xbf16>
    %c160_111 = arith.constant 160 : index
    %c0_112 = arith.constant 0 : index
    %308 = vector.load %arg2[%c160_111, %c0_112] : memref<816x256xbf16, #tpu.memory_space<vmem>>, vector<256x16xbf16>
    %cst_113 = arith.constant dense<0.000000e+00> : vector<2x16xf32>
    %309 = tpu.matmul %307, %308, %cst_113 {dimension_numbers = #tpu.dot_dimension_numbers<[1], [0], [0], [1], [0, 0, 1, 1], [], []>} : vector<2x256xbf16>, vector<256x16xbf16>, vector<2x16xf32> -> vector<2x16xf32>
    %310 = vector.extract_strided_slice %309 {offsets = [0, 0], sizes = [1, 16], strides = [1, 1]} : vector<2x16xf32> to vector<1x16xf32>
    %311 = vector.extract_strided_slice %309 {offsets = [1, 0], sizes = [1, 16], strides = [1, 1]} : vector<2x16xf32> to vector<1x16xf32>
    %312 = arith.mulf %310, %310 : vector<1x16xf32>
    %313 = arith.subf %311, %312 : vector<1x16xf32>
    %cst_114 = arith.constant 0.000000e+00 : f32
    %314 = vector.broadcast %cst_114 : f32 to vector<1x16xf32>
    %315 = arith.maximumf %313, %314 : vector<1x16xf32>
    %cst_115 = arith.constant 9.99999974E-6 : f32
    %316 = vector.broadcast %cst_115 : f32 to vector<1x16xf32>
    %317 = arith.addf %315, %316 : vector<1x16xf32>
    %318 = math.rsqrt %317 : vector<1x16xf32>
    %319 = tpu.iota {dimensions = array<i32: 0>} : vector<2x16xi32>
    %c0_i32_116 = arith.constant 0 : i32
    %320 = vector.broadcast %c0_i32_116 : i32 to vector<2x16xi32>
    %321 = arith.cmpi eq, %319, %320 : vector<2x16xi32>
    %322 = vector.shape_cast %310 : vector<1x16xf32> to vector<1x16xf32>
    %323 = vector.broadcast %322 : vector<1x16xf32> to vector<2x16xf32>
    %324 = vector.shape_cast %318 : vector<1x16xf32> to vector<1x16xf32>
    %325 = vector.broadcast %324 : vector<1x16xf32> to vector<2x16xf32>
    %326 = arith.select %321, %323, %325 : vector<2x16xi1>, vector<2x16xf32>
    %327 = arith.truncf %326 : vector<2x16xf32> to vector<2x16xbf16>
    %c0_117 = arith.constant 0 : index
    %c0_118 = arith.constant 0 : index
    %328 = vector.load %arg2[%c0_117, %c0_118] : memref<816x256xbf16, #tpu.memory_space<vmem>>, vector<16x256xbf16>
    %cst_119 = arith.constant dense<0.000000e+00> : vector<2x256xf32>
    %329 = tpu.matmul %327, %328, %cst_119 {dimension_numbers = #tpu.dot_dimension_numbers<[1], [0], [0], [1], [0, 0, 1, 1], [], []>} : vector<2x16xbf16>, vector<16x256xbf16>, vector<2x256xf32> -> vector<2x256xf32>
    %330 = vector.extract_strided_slice %329 {offsets = [0, 0], sizes = [1, 256], strides = [1, 1]} : vector<2x256xf32> to vector<1x256xf32>
    %331 = vector.broadcast %330 : vector<1x256xf32> to vector<2x256xf32>
    %332 = arith.subf %289, %331 : vector<2x256xf32>
    %333 = vector.extract_strided_slice %329 {offsets = [1, 0], sizes = [1, 256], strides = [1, 1]} : vector<2x256xf32> to vector<1x256xf32>
    %334 = vector.broadcast %333 : vector<1x256xf32> to vector<2x256xf32>
    %335 = arith.mulf %332, %334 : vector<2x256xf32>
    %336 = arith.truncf %335 : vector<2x256xf32> to vector<2x256xbf16>
    %c160_120 = arith.constant 160 : index
    %c128_121 = arith.constant 128 : index
    %337 = vector.load %arg2[%c160_120, %c128_121] : memref<816x256xbf16, #tpu.memory_space<vmem>>, vector<256x128xbf16>
    %cst_122 = arith.constant dense<0.000000e+00> : vector<2x128xf32>
    %338 = tpu.matmul %336, %337, %cst_122 {dimension_numbers = #tpu.dot_dimension_numbers<[1], [0], [0], [1], [0, 0, 1, 1], [], []>} : vector<2x256xbf16>, vector<256x128xbf16>, vector<2x128xf32> -> vector<2x128xf32>
    %c0_123 = arith.constant 0 : index
    %c1536 = arith.constant 1536 : index
    %339 = vector.load %arg3[%c0_123, %c1536] : memref<1x1792xf32, #tpu.memory_space<vmem>>, vector<1x128xf32>
    %340 = vector.broadcast %339 : vector<1x128xf32> to vector<2x128xf32>
    %341 = arith.addf %338, %340 : vector<2x128xf32>
    %cst_124 = arith.constant 0.000000e+00 : f32
    %342 = vector.broadcast %cst_124 : f32 to vector<2x128xf32>
    %343 = arith.cmpf oge, %341, %342 : vector<2x128xf32>
    %cst_125 = arith.constant 0.00999999977 : f32
    %344 = vector.broadcast %cst_125 : f32 to vector<2x128xf32>
    %345 = arith.mulf %344, %341 : vector<2x128xf32>
    %346 = arith.select %343, %341, %345 : vector<2x128xi1>, vector<2x128xf32>
    %cst_126 = arith.constant dense<0.000000e+00> : vector<128xf32>
    %347 = vector.multi_reduction <add>, %346, %cst_126 [0] : vector<2x128xf32> to vector<128xf32>
    %348 = vector.shape_cast %347 : vector<128xf32> to vector<1x128xf32>
    %cst_127 = arith.constant 2.000000e+00 : f32
    %349 = vector.broadcast %cst_127 : f32 to vector<1x128xf32>
    %350 = arith.divf %348, %349 : vector<1x128xf32>
    %351 = arith.mulf %346, %346 : vector<2x128xf32>
    %cst_128 = arith.constant dense<0.000000e+00> : vector<128xf32>
    %352 = vector.multi_reduction <add>, %351, %cst_128 [0] : vector<2x128xf32> to vector<128xf32>
    %353 = vector.shape_cast %352 : vector<128xf32> to vector<1x128xf32>
    %cst_129 = arith.constant 2.000000e+00 : f32
    %354 = vector.broadcast %cst_129 : f32 to vector<1x128xf32>
    %355 = arith.divf %353, %354 : vector<1x128xf32>
    %356 = tpu.iota {dimensions = array<i32: 0>} : vector<2x128xi32>
    %c0_i32_130 = arith.constant 0 : i32
    %357 = vector.broadcast %c0_i32_130 : i32 to vector<2x128xi32>
    %358 = arith.cmpi eq, %356, %357 : vector<2x128xi32>
    %359 = vector.shape_cast %350 : vector<1x128xf32> to vector<1x128xf32>
    %360 = vector.broadcast %359 : vector<1x128xf32> to vector<2x128xf32>
    %361 = vector.shape_cast %355 : vector<1x128xf32> to vector<1x128xf32>
    %362 = vector.broadcast %361 : vector<1x128xf32> to vector<2x128xf32>
    %363 = arith.select %358, %360, %362 : vector<2x128xi1>, vector<2x128xf32>
    %364 = arith.truncf %363 : vector<2x128xf32> to vector<2x128xbf16>
    %c416_131 = arith.constant 416 : index
    %c128_132 = arith.constant 128 : index
    %365 = vector.load %arg2[%c416_131, %c128_132] : memref<816x256xbf16, #tpu.memory_space<vmem>>, vector<128x16xbf16>
    %cst_133 = arith.constant dense<0.000000e+00> : vector<2x16xf32>
    %366 = tpu.matmul %364, %365, %cst_133 {dimension_numbers = #tpu.dot_dimension_numbers<[1], [0], [0], [1], [0, 0, 1, 1], [], []>} : vector<2x128xbf16>, vector<128x16xbf16>, vector<2x16xf32> -> vector<2x16xf32>
    %367 = vector.extract_strided_slice %366 {offsets = [0, 0], sizes = [1, 16], strides = [1, 1]} : vector<2x16xf32> to vector<1x16xf32>
    %368 = vector.extract_strided_slice %366 {offsets = [1, 0], sizes = [1, 16], strides = [1, 1]} : vector<2x16xf32> to vector<1x16xf32>
    %369 = arith.mulf %367, %367 : vector<1x16xf32>
    %370 = arith.subf %368, %369 : vector<1x16xf32>
    %cst_134 = arith.constant 0.000000e+00 : f32
    %371 = vector.broadcast %cst_134 : f32 to vector<1x16xf32>
    %372 = arith.maximumf %370, %371 : vector<1x16xf32>
    %cst_135 = arith.constant 9.99999974E-6 : f32
    %373 = vector.broadcast %cst_135 : f32 to vector<1x16xf32>
    %374 = arith.addf %372, %373 : vector<1x16xf32>
    %375 = math.rsqrt %374 : vector<1x16xf32>
    %376 = tpu.iota {dimensions = array<i32: 0>} : vector<2x16xi32>
    %c0_i32_136 = arith.constant 0 : i32
    %377 = vector.broadcast %c0_i32_136 : i32 to vector<2x16xi32>
    %378 = arith.cmpi eq, %376, %377 : vector<2x16xi32>
    %379 = vector.shape_cast %367 : vector<1x16xf32> to vector<1x16xf32>
    %380 = vector.broadcast %379 : vector<1x16xf32> to vector<2x16xf32>
    %381 = vector.shape_cast %375 : vector<1x16xf32> to vector<1x16xf32>
    %382 = vector.broadcast %381 : vector<1x16xf32> to vector<2x16xf32>
    %383 = arith.select %378, %380, %382 : vector<2x16xi1>, vector<2x16xf32>
    %384 = arith.truncf %383 : vector<2x16xf32> to vector<2x16xbf16>
    %c720_137 = arith.constant 720 : index
    %c128_138 = arith.constant 128 : index
    %385 = vector.load %arg2[%c720_137, %c128_138] : memref<816x256xbf16, #tpu.memory_space<vmem>>, vector<16x128xbf16>
    %cst_139 = arith.constant dense<0.000000e+00> : vector<2x128xf32>
    %386 = tpu.matmul %384, %385, %cst_139 {dimension_numbers = #tpu.dot_dimension_numbers<[1], [0], [0], [1], [0, 0, 1, 1], [], []>} : vector<2x16xbf16>, vector<16x128xbf16>, vector<2x128xf32> -> vector<2x128xf32>
    %387 = vector.extract_strided_slice %386 {offsets = [0, 0], sizes = [1, 128], strides = [1, 1]} : vector<2x128xf32> to vector<1x128xf32>
    %388 = vector.broadcast %387 : vector<1x128xf32> to vector<2x128xf32>
    %389 = arith.subf %346, %388 : vector<2x128xf32>
    %390 = vector.extract_strided_slice %386 {offsets = [1, 0], sizes = [1, 128], strides = [1, 1]} : vector<2x128xf32> to vector<1x128xf32>
    %391 = vector.broadcast %390 : vector<1x128xf32> to vector<2x128xf32>
    %392 = arith.mulf %389, %391 : vector<2x128xf32>
    %393 = arith.truncf %392 : vector<2x128xf32> to vector<2x128xbf16>
    %c544 = arith.constant 544 : index
    %c128_140 = arith.constant 128 : index
    %394 = vector.load %arg2[%c544, %c128_140] : memref<816x256xbf16, #tpu.memory_space<vmem>>, vector<128x128xbf16>
    %cst_141 = arith.constant dense<0.000000e+00> : vector<2x128xf32>
    %395 = tpu.matmul %393, %394, %cst_141 {dimension_numbers = #tpu.dot_dimension_numbers<[1], [0], [0], [1], [0, 0, 1, 1], [], []>} : vector<2x128xbf16>, vector<128x128xbf16>, vector<2x128xf32> -> vector<2x128xf32>
    %c0_142 = arith.constant 0 : index
    %c1664 = arith.constant 1664 : index
    %396 = vector.load %arg3[%c0_142, %c1664] : memref<1x1792xf32, #tpu.memory_space<vmem>>, vector<1x128xf32>
    %397 = vector.broadcast %396 : vector<1x128xf32> to vector<2x128xf32>
    %398 = arith.addf %395, %397 : vector<2x128xf32>
    %cst_143 = arith.constant 0.000000e+00 : f32
    %399 = vector.broadcast %cst_143 : f32 to vector<2x128xf32>
    %400 = arith.cmpf oge, %398, %399 : vector<2x128xf32>
    %cst_144 = arith.constant 0.00999999977 : f32
    %401 = vector.broadcast %cst_144 : f32 to vector<2x128xf32>
    %402 = arith.mulf %401, %398 : vector<2x128xf32>
    %403 = arith.select %400, %398, %402 : vector<2x128xi1>, vector<2x128xf32>
    %c0_145 = arith.constant 0 : index
    %c0_146 = arith.constant 0 : index
    %c0_147 = arith.constant 0 : index
    %404 = vector.load %arg4[%c0_145, %c0_146, %c0_147] : memref<3x2x128xf32, #tpu.memory_space<vmem>>, vector<1x2x128xf32>
    %405 = vector.shape_cast %404 : vector<1x2x128xf32> to vector<2x128xf32>
    %406 = vector.shape_cast %163 : vector<2x128xf32> to vector<1x2x128xf32>
    tpu.vector_store %arg4[%c0_145, %c0_146, %c0_147], %406 {strides = array<i32>} : memref<3x2x128xf32, #tpu.memory_space<vmem>>, vector<1x2x128xf32>,
    %c1 = arith.constant 1 : index
    %c0_148 = arith.constant 0 : index
    %c0_149 = arith.constant 0 : index
    %407 = vector.load %arg4[%c1, %c0_148, %c0_149] : memref<3x2x128xf32, #tpu.memory_space<vmem>>, vector<1x2x128xf32>
    %408 = vector.shape_cast %407 : vector<1x2x128xf32> to vector<2x128xf32>
    %409 = vector.shape_cast %251 : vector<2x128xf32> to vector<1x2x128xf32>
    tpu.vector_store %arg4[%c1, %c0_148, %c0_149], %409 {strides = array<i32>} : memref<3x2x128xf32, #tpu.memory_space<vmem>>, vector<1x2x128xf32>,
    %c2 = arith.constant 2 : index
    %c0_150 = arith.constant 0 : index
    %c0_151 = arith.constant 0 : index
    %410 = vector.load %arg4[%c2, %c0_150, %c0_151] : memref<3x2x128xf32, #tpu.memory_space<vmem>>, vector<1x2x128xf32>
    %411 = vector.shape_cast %410 : vector<1x2x128xf32> to vector<2x128xf32>
    %412 = vector.shape_cast %403 : vector<2x128xf32> to vector<1x2x128xf32>
    tpu.vector_store %arg4[%c2, %c0_150, %c0_151], %412 {strides = array<i32>} : memref<3x2x128xf32, #tpu.memory_space<vmem>>, vector<1x2x128xf32>,
    return
  }
}

</mosaic_0001>

<llo_original>
// kernel: forward.1
$region0: #{forward.1}
  #allocation0 [shape = 'u32[]', space=smem, size = 0x4, offset = 0x4, fixed_abs, tag = 'smem constant byte address 0x4 - core index']
  #allocation1 [shape = 'u32[144,128]{1,0:T(1,128)}', space=vmem, size = 0x12000, scoped, tag = 'internal scratch']
  %s0 = inlined_call_operand.vmem [shape: f32[2,16], index: 0, kind: input, shape index: {}]
  %s1 = inlined_call_operand.hbm [shape: f32[2,2], index: 1, kind: input, shape index: {}]
  %s2 = inlined_call_operand.hbm [shape: bf16[816,256], index: 2, kind: input, shape index: {}]
  %s3 = inlined_call_operand.hbm [shape: f32[1,1792], index: 3, kind: input, shape index: {}]
  %s4 = inlined_call_operand.vmem [shape: f32[3,2,128], index: 4, kind: output, shape index: {}]
  %s5 = sld [smem:[#allocation0]]
  $region38: #{forward.1} parent=0
    _
  %s7 = ssub.s32 1, %s5
  %s8 = scalar_select 0, %s7, %s5
  $region1: #{forward.1} parent=0
    #allocation2 [shape = 'u8[1024]{0}', space=vmem, size = 0x400, scoped, tag = 'input window, operand 1, single buffered']
    #allocation3 [shape = 's32[1]{0}', space=sflag, size = 0x4, scoped, tag = 'scoped memory for forward.1']
    #allocation4 [shape = 'u8[417792]{0}', space=vmem, size = 0x66000, scoped, tag = 'input window, operand 2, single buffered']
    #allocation5 [shape = 's32[1]{0}', space=sflag, size = 0x4, scoped, tag = 'scoped memory for forward.1']
    #allocation6 [shape = 'u8[7168]{0}', space=vmem, size = 0x1c00, scoped, tag = 'input window, operand 3, single buffered']
    %9 = vsyncpa [#allocation3], 0
    %10 = vsyncpa [#allocation5], 0
    // Predicated region
    $region2: #{forward.1} parent=1 // pred_check
      _
    $region3: #{forward.1} parent=1 // pred_check_branch
      %12 = sbr.rel (0) target = $region5
    $region4: #{forward.1} parent=1 // pred_region
      _
    $region5: #{forward.1} parent=1 // pred_fallthru
      _
    // Predicated region
    $region6: #{forward.1} parent=1 // pred_check
      _
    $region7: #{forward.1} parent=1 // pred_check_branch
      %14 = sbr.rel (0) target = $region9
    $region8: #{forward.1} parent=1 // pred_region
      %s16 = ssub.s32 32, 32
      %17 = vsyncadd [#allocation3], %s16
      %s19 = sshll.u32 [#allocation2], 4
      %s20 = int_to_ptr.vmem [resolvable:$true] %s19
      %22 = dma.hbm_to_vmem [thread:$0]  %s1, 32, %s20, [#allocation3]
    $region9: #{forward.1} parent=1 // pred_fallthru
      _
    // Predicated region
    $region10: #{forward.1} parent=1 // pred_check
      _
    $region11: #{forward.1} parent=1 // pred_check_branch
      %24 = sbr.rel (0) target = $region13
    $region12: #{forward.1} parent=1 // pred_region
      %s26 = ssub.s32 13056, 13056
      %27 = vsyncadd [#allocation5], %s26
      %s28 = sshll.u32 [#allocation4], 4
      %s29 = int_to_ptr.vmem [resolvable:$true] %s28
      %34 = dma.hbm_to_vmem [thread:$0]  %s2, 13056, %s29, [#allocation5], 128, 128, 8
    $region13: #{forward.1} parent=1 // pred_fallthru
      _
    // Predicated region
    $region14: #{forward.1} parent=1 // pred_check
      _
    $region15: #{forward.1} parent=1 // pred_check_branch
      %36 = sbr.rel (0) target = $region17
    $region16: #{forward.1} parent=1 // pred_region
      %s38 = ssub.s32 224, 224
      %39 = vsyncadd [#allocation5], %s38
      %s41 = sshll.u32 [#allocation6], 4
      %s42 = int_to_ptr.vmem [resolvable:$true] %s41
      %44 = dma.hbm_to_vmem [thread:$0]  %s3, 224, %s42, [#allocation5]
    $region17: #{forward.1} parent=1 // pred_fallthru
      _
    // Predicated region
    $region18: #{forward.1} parent=1 // pred_check
      _
    $region19: #{forward.1} parent=1 // pred_check_branch
      %46 = sbr.rel (0) target = $region21
    $region20: #{forward.1} parent=1 // pred_region
      %47 = dma.done [#allocation3], 32
    $region21: #{forward.1} parent=1 // pred_fallthru
      _
    // Predicated region
    $region22: #{forward.1} parent=1 // pred_check
      _
    $region23: #{forward.1} parent=1 // pred_check_branch
      %49 = sbr.rel (0) target = $region25
    $region24: #{forward.1} parent=1 // pred_region
      %50 = dma.done [#allocation5], 13056
    $region25: #{forward.1} parent=1 // pred_fallthru
      _
    // Predicated region
    $region26: #{forward.1} parent=1 // pred_check
      _
    $region27: #{forward.1} parent=1 // pred_check_branch
      %52 = sbr.rel (0) target = $region29
    $region28: #{forward.1} parent=1 // pred_region
      %53 = dma.done [#allocation5], 224
    $region29: #{forward.1} parent=1 // pred_fallthru
      _
    %v55 = vld [vmem:[%s0] sm:$0x3]
    %vm56 = vcmask 123904
    %v57 = vsel %vm56, %v55, 0.0
    %58 = vadd.xlane.f32.xlu0 %v57
    %v59 = vpop.xlane.xlu0 %58
    %v60 = vrcp.pop 16.0
    %v61 = vmul.f32 %v59, %v60
    %v62 = vsub.f32 %v55, %v61
    %v63 = vmul.f32 %v62, %v62
    %v64 = vsel %vm56, %v63, 0.0
    %65 = vadd.xlane.f32.xlu0 %v64
    %v66 = vpop.xlane.xlu0 %65
    %v67 = vmul.f32 %v66, %v60
    %v68 = vadd.f32 %v67, 1e-05
    %v69 = vrsqrt.pop %v68
    %v70 = vmul.f32 %v62, %v69
    %v71 = vpack.c.bf16 %v70, %v70
    %v72 = vld [vmem:[#allocation4 + $0x2e4] sm:$0xf]
    %v73 = vld [vmem:[#allocation4 + $0x2ec] sm:$0xf]
    %v74 = vld [vmem:[#allocation6] sm:$0x1]
    %v76 = vlaneseq
    %v77 = vshrl.u32 %v76, 7
    %v78 = vsub.s32 0, %v77
    %v79 = vrot.slane %v74, %v78
    %v83 = vunpack.c.l.b16 %v72
    %v84 = vunpack.c.l.b16 %v73
    %v85 = vpack.c.b16 %v84, %v83
    %vm87 = vcmask 130048
    %v89 = vsel %vm87, %v71, 0
    %91 = vmatprep.subr.bf16.mxu0 0
    %92 = vmatpush1.bf16.msra.mxu0 0
    %93 = vmatprep.subr.bf16.mxu0 0
    %94 = vmatpush1.bf16.msra.mxu0 0
    %95 = vmatprep.subr.bf16.mxu0 0
    %96 = vmatpush1.bf16.msra.mxu0 0
    %97 = vmatprep.subr.bf16.mxu0 0
    %98 = vmatpush1.bf16.msra.mxu0 0
    %99 = vmatprep.subr.bf16.mxu0 0
    %100 = vmatpush1.bf16.msra.mxu0 0
    %101 = vmatprep.subr.bf16.mxu0 0
    %102 = vmatpush1.bf16.msra.mxu0 0
    %103 = vmatprep.subr.bf16.mxu0 0
    %104 = vmatpush1.bf16.msra.mxu0 0
    %105 = vmatprep.subr.bf16.mxu0 0
    %106 = vmatpush1.bf16.msra.mxu0 %v85
    %107 = vmatprep.subr.bf16.mxu0 0
    %108 = vmatpush2.bf16.msra.mxu0 0
    %109 = vmatprep.subr.bf16.mxu0 0
    %110 = vmatpush2.bf16.msra.mxu0 0
    %111 = vmatprep.subr.bf16.mxu0 0
    %112 = vmatpush2.bf16.msra.mxu0 0
    %113 = vmatprep.subr.bf16.mxu0 0
    %114 = vmatpush2.bf16.msra.mxu0 0
    %115 = vmatprep.subr.bf16.mxu0 0
    %116 = vmatpush2.bf16.msra.mxu0 0
    %117 = vmatprep.subr.bf16.mxu0 0
    %118 = vmatpush2.bf16.msra.mxu0 0
    %119 = vmatprep.subr.bf16.mxu0 0
    %120 = vmatpush2.bf16.msra.mxu0 0
    %121 = vmatprep.subr.bf16.mxu0 0
    %122 = vmatpush2.bf16.msra.mxu0 0
    %123 = vmatprep.mubr.bf16.mxu0 0
    %124 = vmatmul.mubr.bf16.gmra.mxu0 %v89
    %v125 = vpop.f32.mrf.mxu0
    %v126 = vadd.f32 %v79, %v125
    %v127 = vpop.f32.mrf.mxu0
    %v128 = vpop.f32.mrf.mxu0
    %v129 = vpop.f32.mrf.mxu0
    %130 = vdwg.mxu0
    %vm131 = vcmp.ge.f32.partialorder %v126, 0.0
    %v132 = vmul.f32 %v126, 0.01
    %v133 = vsel %vm131, %v126, %v132
    %vm134 = vcmask 1041408
    %v135 = vsel %vm134, %v133, 0.0
    %v136 = vrot.slane %v135, 4
    %v137 = vadd.f32 %v135, %v136
    %v138 = vrot.slane %v137, 2
    %v139 = vadd.f32 %v137, %v138
    %v140 = vrot.slane %v139, 1
    %v141 = vadd.f32 %v139, %v140
    %v142 = vrcp.pop 2.0
    %v143 = vmul.f32 %v141, %v142
    %v144 = vmul.f32 %v133, %v133
    %v145 = vsel %vm134, %v144, 0.0
    %v146 = vrot.slane %v145, 4
    %v147 = vadd.f32 %v145, %v146
    %v148 = vrot.slane %v147, 2
    %v149 = vadd.f32 %v147, %v148
    %v150 = vrot.slane %v149, 1
    %v151 = vadd.f32 %v149, %v150
    %v152 = vmul.f32 %v151, %v142
    %v153 = vlaneseq
    %v154 = vshrl.u32 %v153, 7
    %vm155 = vcmp.eq.s32.totalorder %v154, 0
    %v156 = vsel %vm155, %v143, %v152
    %v157 = vpack.c.bf16 %v156, %v156
    %v158 = vld [vmem:[#allocation4 + $0x1a4] sm:$0xf]
    %v159 = vld [vmem:[#allocation4 + $0x1ac] sm:$0xf]
    %v160 = vld [vmem:[#allocation4 + $0x1b4] sm:$0xf]
    %v161 = vld [vmem:[#allocation4 + $0x1bc] sm:$0xf]
    %v162 = vld [vmem:[#allocation4 + $0x1c4] sm:$0xf]
    %v163 = vld [vmem:[#allocation4 + $0x1cc] sm:$0xf]
    %v164 = vld [vmem:[#allocation4 + $0x1d4] sm:$0xf]
    %v165 = vld [vmem:[#allocation4 + $0x1dc] sm:$0xf]
    %v166 = vld [vmem:[#allocation4 + $0x1e4] sm:$0xf]
    %v167 = vld [vmem:[#allocation4 + $0x1ec] sm:$0xf]
    %v168 = vld [vmem:[#allocation4 + $0x1f4] sm:$0xf]
    %v169 = vld [vmem:[#allocation4 + $0x1fc] sm:$0xf]
    %v170 = vld [vmem:[#allocation4 + $0x204] sm:$0xf]
    %v171 = vld [vmem:[#allocation4 + $0x20c] sm:$0xf]
    %v172 = vld [vmem:[#allocation4 + $0x214] sm:$0xf]
    %v173 = vld [vmem:[#allocation4 + $0x21c] sm:$0xf]
    %v190 = vunpack.c.l.b16 %v158
    %v191 = vunpack.c.l.b16 %v159
    %v192 = vunpack.c.l.b16 %v160
    %v193 = vunpack.c.l.b16 %v161
    %v194 = vunpack.c.l.b16 %v162
    %v195 = vunpack.c.l.b16 %v163
    %v196 = vunpack.c.l.b16 %v164
    %v197 = vunpack.c.l.b16 %v165
    %v198 = vunpack.c.l.b16 %v166
    %v199 = vunpack.c.l.b16 %v167
    %v200 = vunpack.c.l.b16 %v168
    %v201 = vunpack.c.l.b16 %v169
    %v202 = vunpack.c.l.b16 %v170
    %v203 = vunpack.c.l.b16 %v171
    %v204 = vunpack.c.l.b16 %v172
    %v205 = vunpack.c.l.b16 %v173
    %v206 = vpack.c.b16 %v191, %v190
    %v207 = vpack.c.b16 %v193, %v192
    %v208 = vpack.c.b16 %v195, %v194
    %v209 = vpack.c.b16 %v197, %v196
    %v210 = vpack.c.b16 %v199, %v198
    %v211 = vpack.c.b16 %v201, %v200
    %v212 = vpack.c.b16 %v203, %v202
    %v213 = vpack.c.b16 %v205, %v204
    %222 = vmatprep.subr.bf16.mxu0 0
    %223 = vmatpush1.bf16.msra.mxu0 %v213
    %224 = vmatprep.subr.bf16.mxu0 0
    %225 = vmatpush1.bf16.msra.mxu0 %v212
    %226 = vmatprep.subr.bf16.mxu0 0
    %227 = vmatpush1.bf16.msra.mxu0 %v211
    %228 = vmatprep.subr.bf16.mxu0 0
    %229 = vmatpush1.bf16.msra.mxu0 %v210
    %230 = vmatprep.subr.bf16.mxu0 0
    %231 = vmatpush1.bf16.msra.mxu0 %v209
    %232 = vmatprep.subr.bf16.mxu0 0
    %233 = vmatpush1.bf16.msra.mxu0 %v208
    %234 = vmatprep.subr.bf16.mxu0 0
    %235 = vmatpush1.bf16.msra.mxu0 %v207
    %236 = vmatprep.subr.bf16.mxu0 0
    %237 = vmatpush1.bf16.msra.mxu0 %v206
    %238 = vmatprep.subr.bf16.mxu0 0
    %239 = vmatpush2.bf16.msra.mxu0 0
    %240 = vmatprep.subr.bf16.mxu0 0
    %241 = vmatpush2.bf16.msra.mxu0 0
    %242 = vmatprep.subr.bf16.mxu0 0
    %243 = vmatpush2.bf16.msra.mxu0 0
    %244 = vmatprep.subr.bf16.mxu0 0
    %245 = vmatpush2.bf16.msra.mxu0 0
    %246 = vmatprep.subr.bf16.mxu0 0
    %247 = vmatpush2.bf16.msra.mxu0 0
    %248 = vmatprep.subr.bf16.mxu0 0
    %249 = vmatpush2.bf16.msra.mxu0 0
    %250 = vmatprep.subr.bf16.mxu0 0
    %251 = vmatpush2.bf16.msra.mxu0 0
    %252 = vmatprep.subr.bf16.mxu0 0
    %253 = vmatpush2.bf16.msra.mxu0 0
    %254 = vmatprep.mubr.bf16.mxu0 0
    %255 = vmatmul.mubr.bf16.gmra.mxu0 %v157
    %v256 = vpop.f32.mrf.mxu0
    %v257 = vadd.f32 0.0, %v256
    %v258 = vpop.f32.mrf.mxu0
    %v259 = vpop.f32.mrf.mxu0
    %v260 = vpop.f32.mrf.mxu0
    %261 = vdwg.mxu0
    %v262 = vmul.f32 %v257, %v257
    %v264 = vrot.slane %v262, 7
    %v266 = vsub.f32 %v257, %v264
    %v267 = vmax.f32 %v266, 0.0
    %v268 = vadd.f32 %v267, 1e-05
    %v269 = vrsqrt.pop %v268
    %v270 = vlaneseq
    %v271 = vshrl.u32 %v270, 7
    %v272 = vsub.s32 0, %v271
    %v273 = vrot.slane %v257, %v272
    %v274 = vlaneseq
    %v275 = vshrl.u32 %v274, 7
    %v276 = vsub.s32 1, %v275
    %v277 = vrot.slane %v269, %v276
    %v278 = vsel %vm155, %v273, %v277
    %v279 = vpack.c.bf16 %v278, %v278
    %v280 = vld [vmem:[#allocation4 + $0x2d4] sm:$0xf]
    %v281 = vld [vmem:[#allocation4 + $0x2dc] sm:$0xf]
    %v284 = vunpack.c.l.b16 %v280
    %v285 = vunpack.c.l.b16 %v281
    %v286 = vpack.c.b16 %v285, %v284
    %v289 = vsel %vm87, %v279, 0
    %291 = vmatprep.subr.bf16.mxu0 0
    %292 = vmatpush1.bf16.msra.mxu0 0
    %293 = vmatprep.subr.bf16.mxu0 0
    %294 = vmatpush1.bf16.msra.mxu0 0
    %295 = vmatprep.subr.bf16.mxu0 0
    %296 = vmatpush1.bf16.msra.mxu0 0
    %297 = vmatprep.subr.bf16.mxu0 0
    %298 = vmatpush1.bf16.msra.mxu0 0
    %299 = vmatprep.subr.bf16.mxu0 0
    %300 = vmatpush1.bf16.msra.mxu0 0
    %301 = vmatprep.subr.bf16.mxu0 0
    %302 = vmatpush1.bf16.msra.mxu0 0
    %303 = vmatprep.subr.bf16.mxu0 0
    %304 = vmatpush1.bf16.msra.mxu0 0
    %305 = vmatprep.subr.bf16.mxu0 0
    %306 = vmatpush1.bf16.msra.mxu0 %v286
    %307 = vmatprep.subr.bf16.mxu0 0
    %308 = vmatpush2.bf16.msra.mxu0 0
    %309 = vmatprep.subr.bf16.mxu0 0
    %310 = vmatpush2.bf16.msra.mxu0 0
    %311 = vmatprep.subr.bf16.mxu0 0
    %312 = vmatpush2.bf16.msra.mxu0 0
    %313 = vmatprep.subr.bf16.mxu0 0
    %314 = vmatpush2.bf16.msra.mxu0 0
    %315 = vmatprep.subr.bf16.mxu0 0
    %316 = vmatpush2.bf16.msra.mxu0 0
    %317 = vmatprep.subr.bf16.mxu0 0
    %318 = vmatpush2.bf16.msra.mxu0 0
    %319 = vmatprep.subr.bf16.mxu0 0
    %320 = vmatpush2.bf16.msra.mxu0 0
    %321 = vmatprep.subr.bf16.mxu0 0
    %322 = vmatpush2.bf16.msra.mxu0 0
    %323 = vmatprep.mubr.bf16.mxu0 0
    %324 = vmatmul.mubr.bf16.gmra.mxu0 %v289
    %v325 = vpop.f32.mrf.mxu0
    %v326 = vadd.f32 0.0, %v325
    %v327 = vpop.f32.mrf.mxu0
    %v328 = vpop.f32.mrf.mxu0
    %v329 = vpop.f32.mrf.mxu0
    %330 = vdwg.mxu0
    %v331 = vlaneseq
    %v332 = vshrl.u32 %v331, 7
    %v333 = vsub.s32 0, %v332
    %v334 = vrot.slane %v326, %v333
    %v335 = vsub.f32 %v133, %v334
    %v336 = vlaneseq
    %v337 = vshrl.u32 %v336, 7
    %v338 = vsub.s32 1, %v337
    %v339 = vrot.slane %v326, %v338
    %v340 = vmul.f32 %v335, %v339
    %v341 = vpack.c.bf16 %v340, %v340
    %v342 = vld [vmem:[#allocation4 + $0x20] sm:$0xff]
    %v343 = vld [vmem:[#allocation4 + $0x28] sm:$0xff]
    %v344 = vld [vmem:[#allocation4 + $0x30] sm:$0xff]
    %v345 = vld [vmem:[#allocation4 + $0x38] sm:$0xff]
    %v346 = vld [vmem:[#allocation4 + $0x40] sm:$0xff]
    %v347 = vld [vmem:[#allocation4 + $0x48] sm:$0xff]
    %v348 = vld [vmem:[#allocation4 + $0x50] sm:$0xff]
    %v349 = vld [vmem:[#allocation4 + $0x58] sm:$0xff]
    %v350 = vld [vmem:[#allocation4 + $0x60] sm:$0xff]
    %v351 = vld [vmem:[#allocation4 + $0x68] sm:$0xff]
    %v352 = vld [vmem:[#allocation4 + $0x70] sm:$0xff]
    %v353 = vld [vmem:[#allocation4 + $0x78] sm:$0xff]
    %v354 = vld [vmem:[#allocation4 + $0x80] sm:$0xff]
    %v355 = vld [vmem:[#allocation4 + $0x88] sm:$0xff]
    %v356 = vld [vmem:[#allocation4 + $0x90] sm:$0xff]
    %v357 = vld [vmem:[#allocation4 + $0x98] sm:$0xff]
    %v358 = vld [vmem:[#allocation6 + $0x1] sm:$0x3]
    %v360 = vlaneseq
    %v361 = vshrl.u32 %v360, 7
    %v362 = vsub.s32 0, %v361
    %v363 = vrot.slane %v358, %v362
    %v364 = vlaneseq
    %v365 = vshrl.u32 %v364, 7
    %v366 = vsub.s32 1, %v365
    %v367 = vrot.slane %v358, %v366
    %v386 = vunpack.c.l.b16 %v342
    %v387 = vunpack.c.h.b16 %v342
    %v388 = vunpack.c.l.b16 %v343
    %v389 = vunpack.c.h.b16 %v343
    %v390 = vunpack.c.l.b16 %v344
    %v391 = vunpack.c.h.b16 %v344
    %v392 = vunpack.c.l.b16 %v345
    %v393 = vunpack.c.h.b16 %v345
    %v394 = vunpack.c.l.b16 %v346
    %v395 = vunpack.c.h.b16 %v346
    %v396 = vunpack.c.l.b16 %v347
    %v397 = vunpack.c.h.b16 %v347
    %v398 = vunpack.c.l.b16 %v348
    %v399 = vunpack.c.h.b16 %v348
    %v400 = vunpack.c.l.b16 %v349
    %v401 = vunpack.c.h.b16 %v349
    %v402 = vunpack.c.l.b16 %v350
    %v403 = vunpack.c.h.b16 %v350
    %v404 = vunpack.c.l.b16 %v351
    %v405 = vunpack.c.h.b16 %v351
    %v406 = vunpack.c.l.b16 %v352
    %v407 = vunpack.c.h.b16 %v352
    %v408 = vunpack.c.l.b16 %v353
    %v409 = vunpack.c.h.b16 %v353
    %v410 = vunpack.c.l.b16 %v354
    %v411 = vunpack.c.h.b16 %v354
    %v412 = vunpack.c.l.b16 %v355
    %v413 = vunpack.c.h.b16 %v355
    %v414 = vunpack.c.l.b16 %v356
    %v415 = vunpack.c.h.b16 %v356
    %v416 = vunpack.c.l.b16 %v357
    %v417 = vunpack.c.h.b16 %v357
    %v418 = vpack.c.b16 %v388, %v386
    %v419 = vpack.c.b16 %v389, %v387
    %v420 = vpack.c.b16 %v392, %v390
    %v421 = vpack.c.b16 %v393, %v391
    %v422 = vpack.c.b16 %v396, %v394
    %v423 = vpack.c.b16 %v397, %v395
    %v424 = vpack.c.b16 %v400, %v398
    %v425 = vpack.c.b16 %v401, %v399
    %v426 = vpack.c.b16 %v404, %v402
    %v427 = vpack.c.b16 %v405, %v403
    %v428 = vpack.c.b16 %v408, %v406
    %v429 = vpack.c.b16 %v409, %v407
    %v430 = vpack.c.b16 %v412, %v410
    %v431 = vpack.c.b16 %v413, %v411
    %v432 = vpack.c.b16 %v416, %v414
    %v433 = vpack.c.b16 %v417, %v415
    %450 = vmatprep.subr.bf16.mxu0 %v433
    %451 = vmatpush1.bf16.msra.mxu0 %v432
    %452 = vmatprep.subr.bf16.mxu0 %v431
    %453 = vmatpush1.bf16.msra.mxu0 %v430
    %454 = vmatprep.subr.bf16.mxu0 %v429
    %455 = vmatpush1.bf16.msra.mxu0 %v428
    %456 = vmatprep.subr.bf16.mxu0 %v427
    %457 = vmatpush1.bf16.msra.mxu0 %v426
    %458 = vmatprep.subr.bf16.mxu0 %v425
    %459 = vmatpush1.bf16.msra.mxu0 %v424
    %460 = vmatprep.subr.bf16.mxu0 %v423
    %461 = vmatpush1.bf16.msra.mxu0 %v422
    %462 = vmatprep.subr.bf16.mxu0 %v421
    %463 = vmatpush1.bf16.msra.mxu0 %v420
    %464 = vmatprep.subr.bf16.mxu0 %v419
    %465 = vmatpush1.bf16.msra.mxu0 %v418
    %466 = vmatprep.subr.bf16.mxu0 0
    %467 = vmatpush2.bf16.msra.mxu0 0
    %468 = vmatprep.subr.bf16.mxu0 0
    %469 = vmatpush2.bf16.msra.mxu0 0
    %470 = vmatprep.subr.bf16.mxu0 0
    %471 = vmatpush2.bf16.msra.mxu0 0
    %472 = vmatprep.subr.bf16.mxu0 0
    %473 = vmatpush2.bf16.msra.mxu0 0
    %474 = vmatprep.subr.bf16.mxu0 0
    %475 = vmatpush2.bf16.msra.mxu0 0
    %476 = vmatprep.subr.bf16.mxu0 0
    %477 = vmatpush2.bf16.msra.mxu0 0
    %478 = vmatprep.subr.bf16.mxu0 0
    %479 = vmatpush2.bf16.msra.mxu0 0
    %480 = vmatprep.subr.bf16.mxu0 0
    %481 = vmatpush2.bf16.msra.mxu0 0
    %482 = vmatprep.mubr.bf16.mxu0 0
    %483 = vmatmul.mubr.bf16.gmra.mxu0 %v341
    %v484 = vpop.f32.mrf.mxu0
    %v485 = vadd.f32 %v363, %v484
    %v486 = vpop.f32.mrf.mxu0
    %v487 = vadd.f32 %v367, %v486
    %v488 = vpop.f32.mrf.mxu0
    %v489 = vpop.f32.mrf.mxu0
    %490 = vdwg.mxu0
    %vm491 = vcmp.ge.f32.partialorder %v485, 0.0
    %vm492 = vcmp.ge.f32.partialorder %v487, 0.0
    %v493 = vmul.f32 %v485, 0.01
    %v494 = vmul.f32 %v487, 0.01
    %v495 = vsel %vm491, %v485, %v493
    %v496 = vsel %vm492, %v487, %v494
    %v497 = vsel %vm134, %v495, 0.0
    %v498 = vrot.slane %v497, 4
    %v499 = vadd.f32 %v497, %v498
    %v500 = vrot.slane %v499, 2
    %v501 = vadd.f32 %v499, %v500
    %v502 = vrot.slane %v501, 1
    %v503 = vadd.f32 %v501, %v502
    %v504 = vsel %vm134, %v496, 0.0
    %v505 = vrot.slane %v504, 4
    %v506 = vadd.f32 %v504, %v505
    %v507 = vrot.slane %v506, 2
    %v508 = vadd.f32 %v506, %v507
    %v509 = vrot.slane %v508, 1
    %v510 = vadd.f32 %v508, %v509
    %v511 = vmul.f32 %v503, %v142
    %v512 = vmul.f32 %v510, %v142
    %v513 = vmul.f32 %v495, %v495
    %v514 = vmul.f32 %v496, %v496
    %v515 = vsel %vm134, %v513, 0.0
    %v516 = vrot.slane %v515, 4
    %v517 = vadd.f32 %v515, %v516
    %v518 = vrot.slane %v517, 2
    %v519 = vadd.f32 %v517, %v518
    %v520 = vrot.slane %v519, 1
    %v521 = vadd.f32 %v519, %v520
    %v522 = vsel %vm134, %v514, 0.0
    %v523 = vrot.slane %v522, 4
    %v524 = vadd.f32 %v522, %v523
    %v525 = vrot.slane %v524, 2
    %v526 = vadd.f32 %v524, %v525
    %v527 = vrot.slane %v526, 1
    %v528 = vadd.f32 %v526, %v527
    %v529 = vmul.f32 %v521, %v142
    %v530 = vmul.f32 %v528, %v142
    %v531 = vsel %vm155, %v511, %v529
    %v532 = vsel %vm155, %v512, %v530
    %v533 = vpack.c.bf16 %v531, %v531
    %v534 = vpack.c.bf16 %v532, %v532
    %v535 = vld [vmem:[#allocation4 + $0xa0] sm:$0xf]
    %v536 = vld [vmem:[#allocation4 + $0xa8] sm:$0xf]
    %v537 = vld [vmem:[#allocation4 + $0xb0] sm:$0xf]
    %v538 = vld [vmem:[#allocation4 + $0xb8] sm:$0xf]
    %v539 = vld [vmem:[#allocation4 + $0xc0] sm:$0xf]
    %v540 = vld [vmem:[#allocation4 + $0xc8] sm:$0xf]
    %v541 = vld [vmem:[#allocation4 + $0xd0] sm:$0xf]
    %v542 = vld [vmem:[#allocation4 + $0xd8] sm:$0xf]
    %v543 = vld [vmem:[#allocation4 + $0xe0] sm:$0xf]
    %v544 = vld [vmem:[#allocation4 + $0xe8] sm:$0xf]
    %v545 = vld [vmem:[#allocation4 + $0xf0] sm:$0xf]
    %v546 = vld [vmem:[#allocation4 + $0xf8] sm:$0xf]
    %v547 = vld [vmem:[#allocation4 + $0x100] sm:$0xf]
    %v548 = vld [vmem:[#allocation4 + $0x108] sm:$0xf]
    %v549 = vld [vmem:[#allocation4 + $0x110] sm:$0xf]
    %v550 = vld [vmem:[#allocation4 + $0x118] sm:$0xf]
    %v551 = vld [vmem:[#allocation4 + $0x120] sm:$0xf]
    %v552 = vld [vmem:[#allocation4 + $0x128] sm:$0xf]
    %v553 = vld [vmem:[#allocation4 + $0x130] sm:$0xf]
    %v554 = vld [vmem:[#allocation4 + $0x138] sm:$0xf]
    %v555 = vld [vmem:[#allocation4 + $0x140] sm:$0xf]
    %v556 = vld [vmem:[#allocation4 + $0x148] sm:$0xf]
    %v557 = vld [vmem:[#allocation4 + $0x150] sm:$0xf]
    %v558 = vld [vmem:[#allocation4 + $0x158] sm:$0xf]
    %v559 = vld [vmem:[#allocation4 + $0x160] sm:$0xf]
    %v560 = vld [vmem:[#allocation4 + $0x168] sm:$0xf]
    %v561 = vld [vmem:[#allocation4 + $0x170] sm:$0xf]
    %v562 = vld [vmem:[#allocation4 + $0x178] sm:$0xf]
    %v563 = vld [vmem:[#allocation4 + $0x180] sm:$0xf]
    %v564 = vld [vmem:[#allocation4 + $0x188] sm:$0xf]
    %v565 = vld [vmem:[#allocation4 + $0x190] sm:$0xf]
    %v566 = vld [vmem:[#allocation4 + $0x198] sm:$0xf]
    %v599 = vunpack.c.l.b16 %v535
    %v600 = vunpack.c.l.b16 %v536
    %v601 = vunpack.c.l.b16 %v537
    %v602 = vunpack.c.l.b16 %v538
    %v603 = vunpack.c.l.b16 %v539
    %v604 = vunpack.c.l.b16 %v540
    %v605 = vunpack.c.l.b16 %v541
    %v606 = vunpack.c.l.b16 %v542
    %v607 = vunpack.c.l.b16 %v543
    %v608 = vunpack.c.l.b16 %v544
    %v609 = vunpack.c.l.b16 %v545
    %v610 = vunpack.c.l.b16 %v546
    %v611 = vunpack.c.l.b16 %v547
    %v612 = vunpack.c.l.b16 %v548
    %v613 = vunpack.c.l.b16 %v549
    %v614 = vunpack.c.l.b16 %v550
    %v615 = vunpack.c.l.b16 %v551
    %v616 = vunpack.c.l.b16 %v552
    %v617 = vunpack.c.l.b16 %v553
    %v618 = vunpack.c.l.b16 %v554
    %v619 = vunpack.c.l.b16 %v555
    %v620 = vunpack.c.l.b16 %v556
    %v621 = vunpack.c.l.b16 %v557
    %v622 = vunpack.c.l.b16 %v558
    %v623 = vunpack.c.l.b16 %v559
    %v624 = vunpack.c.l.b16 %v560
    %v625 = vunpack.c.l.b16 %v561
    %v626 = vunpack.c.l.b16 %v562
    %v627 = vunpack.c.l.b16 %v563
    %v628 = vunpack.c.l.b16 %v564
    %v629 = vunpack.c.l.b16 %v565
    %v630 = vunpack.c.l.b16 %v566
    %v631 = vpack.c.b16 %v600, %v599
    %v632 = vpack.c.b16 %v602, %v601
    %v633 = vpack.c.b16 %v604, %v603
    %v634 = vpack.c.b16 %v606, %v605
    %v635 = vpack.c.b16 %v608, %v607
    %v636 = vpack.c.b16 %v610, %v609
    %v637 = vpack.c.b16 %v612, %v611
    %v638 = vpack.c.b16 %v614, %v613
    %v639 = vpack.c.b16 %v616, %v615
    %v640 = vpack.c.b16 %v618, %v617
    %v641 = vpack.c.b16 %v620, %v619
    %v642 = vpack.c.b16 %v622, %v621
    %v643 = vpack.c.b16 %v624, %v623
    %v644 = vpack.c.b16 %v626, %v625
    %v645 = vpack.c.b16 %v628, %v627
    %v646 = vpack.c.b16 %v630, %v629
    %663 = vmatprep.subr.bf16.mxu0 0
    %664 = vmatpush1.bf16.msra.mxu0 %v638
    %665 = vmatprep.subr.bf16.mxu0 0
    %666 = vmatpush1.bf16.msra.mxu0 %v637
    %667 = vmatprep.subr.bf16.mxu0 0
    %668 = vmatpush1.bf16.msra.mxu0 %v636
    %669 = vmatprep.subr.bf16.mxu0 0
    %670 = vmatpush1.bf16.msra.mxu0 %v635
    %671 = vmatprep.subr.bf16.mxu0 0
    %672 = vmatpush1.bf16.msra.mxu0 %v634
    %673 = vmatprep.subr.bf16.mxu0 0
    %674 = vmatpush1.bf16.msra.mxu0 %v633
    %675 = vmatprep.subr.bf16.mxu0 0
    %676 = vmatpush1.bf16.msra.mxu0 %v632
    %677 = vmatprep.subr.bf16.mxu0 0
    %678 = vmatpush1.bf16.msra.mxu0 %v631
    %679 = vmatprep.subr.bf16.mxu0 0
    %680 = vmatpush2.bf16.msra.mxu0 %v646
    %681 = vmatprep.subr.bf16.mxu0 0
    %682 = vmatpush2.bf16.msra.mxu0 %v645
    %683 = vmatprep.subr.bf16.mxu0 0
    %684 = vmatpush2.bf16.msra.mxu0 %v644
    %685 = vmatprep.subr.bf16.mxu0 0
    %686 = vmatpush2.bf16.msra.mxu0 %v643
    %687 = vmatprep.subr.bf16.mxu0 0
    %688 = vmatpush2.bf16.msra.mxu0 %v642
    %689 = vmatprep.subr.bf16.mxu0 0
    %690 = vmatpush2.bf16.msra.mxu0 %v641
    %691 = vmatprep.subr.bf16.mxu0 0
    %692 = vmatpush2.bf16.msra.mxu0 %v640
    %693 = vmatprep.subr.bf16.mxu0 0
    %694 = vmatpush2.bf16.msra.mxu0 %v639
    %695 = vmatprep.mubr.bf16.mxu0 %v534
    %696 = vmatmul.mubr.bf16.gmra.mxu0 %v533
    %v697 = vpop.f32.mrf.mxu0
    %v698 = vadd.f32 0.0, %v697
    %v699 = vpop.f32.mrf.mxu0
    %v700 = vpop.f32.mrf.mxu0
    %v701 = vpop.f32.mrf.mxu0
    %702 = vdwg.mxu0
    %v703 = vmul.f32 %v698, %v698
    %v705 = vrot.slane %v703, 7
    %v707 = vsub.f32 %v698, %v705
    %v708 = vmax.f32 %v707, 0.0
    %v709 = vadd.f32 %v708, 1e-05
    %v710 = vrsqrt.pop %v709
    %v711 = vlaneseq
    %v712 = vshrl.u32 %v711, 7
    %v713 = vsub.s32 0, %v712
    %v714 = vrot.slane %v698, %v713
    %v715 = vlaneseq
    %v716 = vshrl.u32 %v715, 7
    %v717 = vsub.s32 1, %v716
    %v718 = vrot.slane %v710, %v717
    %v719 = vsel %vm155, %v714, %v718
    %v720 = vpack.c.bf16 %v719, %v719
    %v721 = vld [vmem:[#allocation4] sm:$0xff]
    %v722 = vld [vmem:[#allocation4 + $0x8] sm:$0xff]
    %v725 = vunpack.c.l.b16 %v721
    %v726 = vunpack.c.h.b16 %v721
    %v727 = vunpack.c.l.b16 %v722
    %v728 = vunpack.c.h.b16 %v722
    %v729 = vpack.c.b16 %v727, %v725
    %v730 = vpack.c.b16 %v728, %v726
    %v734 = vsel %vm87, %v720, 0
    %736 = vmatprep.subr.bf16.mxu0 0
    %737 = vmatpush1.bf16.msra.mxu0 0
    %738 = vmatprep.subr.bf16.mxu0 0
    %739 = vmatpush1.bf16.msra.mxu0 0
    %740 = vmatprep.subr.bf16.mxu0 0
    %741 = vmatpush1.bf16.msra.mxu0 0
    %742 = vmatprep.subr.bf16.mxu0 0
    %743 = vmatpush1.bf16.msra.mxu0 0
    %744 = vmatprep.subr.bf16.mxu0 0
    %745 = vmatpush1.bf16.msra.mxu0 0
    %746 = vmatprep.subr.bf16.mxu0 0
    %747 = vmatpush1.bf16.msra.mxu0 0
    %748 = vmatprep.subr.bf16.mxu0 0
    %749 = vmatpush1.bf16.msra.mxu0 0
    %750 = vmatprep.subr.bf16.mxu0 %v730
    %751 = vmatpush1.bf16.msra.mxu0 %v729
    %752 = vmatprep.subr.bf16.mxu0 0
    %753 = vmatpush2.bf16.msra.mxu0 0
    %754 = vmatprep.subr.bf16.mxu0 0
    %755 = vmatpush2.bf16.msra.mxu0 0
    %756 = vmatprep.subr.bf16.mxu0 0
    %757 = vmatpush2.bf16.msra.mxu0 0
    %758 = vmatprep.subr.bf16.mxu0 0
    %759 = vmatpush2.bf16.msra.mxu0 0
    %760 = vmatprep.subr.bf16.mxu0 0
    %761 = vmatpush2.bf16.msra.mxu0 0
    %762 = vmatprep.subr.bf16.mxu0 0
    %763 = vmatpush2.bf16.msra.mxu0 0
    %764 = vmatprep.subr.bf16.mxu0 0
    %765 = vmatpush2.bf16.msra.mxu0 0
    %766 = vmatprep.subr.bf16.mxu0 0
    %767 = vmatpush2.bf16.msra.mxu0 0
    %768 = vmatprep.mubr.bf16.mxu0 0
    %769 = vmatmul.mubr.bf16.gmra.mxu0 %v734
    %v770 = vpop.f32.mrf.mxu0
    %v771 = vadd.f32 0.0, %v770
    %v772 = vpop.f32.mrf.mxu0
    %v773 = vadd.f32 0.0, %v772
    %v774 = vpop.f32.mrf.mxu0
    %v775 = vpop.f32.mrf.mxu0
    %776 = vdwg.mxu0
    %v777 = vlaneseq
    %v778 = vshrl.u32 %v777, 7
    %v779 = vsub.s32 0, %v778
    %v780 = vrot.slane %v771, %v779
    %v781 = vlaneseq
    %v782 = vshrl.u32 %v781, 7
    %v783 = vsub.s32 0, %v782
    %v784 = vrot.slane %v773, %v783
    %v785 = vsub.f32 %v495, %v780
    %v786 = vsub.f32 %v496, %v784
    %v787 = vlaneseq
    %v788 = vshrl.u32 %v787, 7
    %v789 = vsub.s32 1, %v788
    %v790 = vrot.slane %v771, %v789
    %v791 = vlaneseq
    %v792 = vshrl.u32 %v791, 7
    %v793 = vsub.s32 1, %v792
    %v794 = vrot.slane %v773, %v793
    %v795 = vmul.f32 %v785, %v790
    %v796 = vmul.f32 %v786, %v794
    %v797 = vpack.c.bf16 %v795, %v795
    %v798 = vpack.c.bf16 %v796, %v796
    %v799 = vld [vmem:[#allocation4 + $0x1a0] sm:$0xf]
    %v800 = vld [vmem:[#allocation4 + $0x1a8] sm:$0xf]
    %v801 = vld [vmem:[#allocation4 + $0x1b0] sm:$0xf]
    %v802 = vld [vmem:[#allocation4 + $0x1b8] sm:$0xf]
    %v803 = vld [vmem:[#allocation4 + $0x1c0] sm:$0xf]
    %v804 = vld [vmem:[#allocation4 + $0x1c8] sm:$0xf]
    %v805 = vld [vmem:[#allocation4 + $0x1d0] sm:$0xf]
    %v806 = vld [vmem:[#allocation4 + $0x1d8] sm:$0xf]
    %v807 = vld [vmem:[#allocation4 + $0x1e0] sm:$0xf]
    %v808 = vld [vmem:[#allocation4 + $0x1e8] sm:$0xf]
    %v809 = vld [vmem:[#allocation4 + $0x1f0] sm:$0xf]
    %v810 = vld [vmem:[#allocation4 + $0x1f8] sm:$0xf]
    %v811 = vld [vmem:[#allocation4 + $0x200] sm:$0xf]
    %v812 = vld [vmem:[#allocation4 + $0x208] sm:$0xf]
    %v813 = vld [vmem:[#allocation4 + $0x210] sm:$0xf]
    %v814 = vld [vmem:[#allocation4 + $0x218] sm:$0xf]
    %v815 = vld [vmem:[#allocation4 + $0x220] sm:$0xf]
    %v816 = vld [vmem:[#allocation4 + $0x228] sm:$0xf]
    %v817 = vld [vmem:[#allocation4 + $0x230] sm:$0xf]
    %v818 = vld [vmem:[#allocation4 + $0x238] sm:$0xf]
    %v819 = vld [vmem:[#allocation4 + $0x240] sm:$0xf]
    %v820 = vld [vmem:[#allocation4 + $0x248] sm:$0xf]
    %v821 = vld [vmem:[#allocation4 + $0x250] sm:$0xf]
    %v822 = vld [vmem:[#allocation4 + $0x258] sm:$0xf]
    %v823 = vld [vmem:[#allocation4 + $0x260] sm:$0xf]
    %v824 = vld [vmem:[#allocation4 + $0x268] sm:$0xf]
    %v825 = vld [vmem:[#allocation4 + $0x270] sm:$0xf]
    %v826 = vld [vmem:[#allocation4 + $0x278] sm:$0xf]
    %v827 = vld [vmem:[#allocation4 + $0x280] sm:$0xf]
    %v828 = vld [vmem:[#allocation4 + $0x288] sm:$0xf]
    %v829 = vld [vmem:[#allocation4 + $0x290] sm:$0xf]
    %v830 = vld [vmem:[#allocation4 + $0x298] sm:$0xf]
    %v831 = vld [vmem:[#allocation6 + $0x3] sm:$0x1]
    %v833 = vlaneseq
    %v834 = vshrl.u32 %v833, 7
    %v835 = vsub.s32 0, %v834
    %v836 = vrot.slane %v831, %v835
    %v870 = vunpack.c.l.b16 %v799
    %v871 = vunpack.c.l.b16 %v800
    %v872 = vunpack.c.l.b16 %v801
    %v873 = vunpack.c.l.b16 %v802
    %v874 = vunpack.c.l.b16 %v803
    %v875 = vunpack.c.l.b16 %v804
    %v876 = vunpack.c.l.b16 %v805
    %v877 = vunpack.c.l.b16 %v806
    %v878 = vunpack.c.l.b16 %v807
    %v879 = vunpack.c.l.b16 %v808
    %v880 = vunpack.c.l.b16 %v809
    %v881 = vunpack.c.l.b16 %v810
    %v882 = vunpack.c.l.b16 %v811
    %v883 = vunpack.c.l.b16 %v812
    %v884 = vunpack.c.l.b16 %v813
    %v885 = vunpack.c.l.b16 %v814
    %v886 = vunpack.c.l.b16 %v815
    %v887 = vunpack.c.l.b16 %v816
    %v888 = vunpack.c.l.b16 %v817
    %v889 = vunpack.c.l.b16 %v818
    %v890 = vunpack.c.l.b16 %v819
    %v891 = vunpack.c.l.b16 %v820
    %v892 = vunpack.c.l.b16 %v821
    %v893 = vunpack.c.l.b16 %v822
    %v894 = vunpack.c.l.b16 %v823
    %v895 = vunpack.c.l.b16 %v824
    %v896 = vunpack.c.l.b16 %v825
    %v897 = vunpack.c.l.b16 %v826
    %v898 = vunpack.c.l.b16 %v827
    %v899 = vunpack.c.l.b16 %v828
    %v900 = vunpack.c.l.b16 %v829
    %v901 = vunpack.c.l.b16 %v830
    %v902 = vpack.c.b16 %v871, %v870
    %v903 = vpack.c.b16 %v873, %v872
    %v904 = vpack.c.b16 %v875, %v874
    %v905 = vpack.c.b16 %v877, %v876
    %v906 = vpack.c.b16 %v879, %v878
    %v907 = vpack.c.b16 %v881, %v880
    %v908 = vpack.c.b16 %v883, %v882
    %v909 = vpack.c.b16 %v885, %v884
    %v910 = vpack.c.b16 %v887, %v886
    %v911 = vpack.c.b16 %v889, %v888
    %v912 = vpack.c.b16 %v891, %v890
    %v913 = vpack.c.b16 %v893, %v892
    %v914 = vpack.c.b16 %v895, %v894
    %v915 = vpack.c.b16 %v897, %v896
    %v916 = vpack.c.b16 %v899, %v898
    %v917 = vpack.c.b16 %v901, %v900
    %934 = vmatprep.subr.bf16.mxu0 0
    %935 = vmatpush1.bf16.msra.mxu0 %v909
    %936 = vmatprep.subr.bf16.mxu0 0
    %937 = vmatpush1.bf16.msra.mxu0 %v908
    %938 = vmatprep.subr.bf16.mxu0 0
    %939 = vmatpush1.bf16.msra.mxu0 %v907
    %940 = vmatprep.subr.bf16.mxu0 0
    %941 = vmatpush1.bf16.msra.mxu0 %v906
    %942 = vmatprep.subr.bf16.mxu0 0
    %943 = vmatpush1.bf16.msra.mxu0 %v905
    %944 = vmatprep.subr.bf16.mxu0 0
    %945 = vmatpush1.bf16.msra.mxu0 %v904
    %946 = vmatprep.subr.bf16.mxu0 0
    %947 = vmatpush1.bf16.msra.mxu0 %v903
    %948 = vmatprep.subr.bf16.mxu0 0
    %949 = vmatpush1.bf16.msra.mxu0 %v902
    %950 = vmatprep.subr.bf16.mxu0 0
    %951 = vmatpush2.bf16.msra.mxu0 %v917
    %952 = vmatprep.subr.bf16.mxu0 0
    %953 = vmatpush2.bf16.msra.mxu0 %v916
    %954 = vmatprep.subr.bf16.mxu0 0
    %955 = vmatpush2.bf16.msra.mxu0 %v915
    %956 = vmatprep.subr.bf16.mxu0 0
    %957 = vmatpush2.bf16.msra.mxu0 %v914
    %958 = vmatprep.subr.bf16.mxu0 0
    %959 = vmatpush2.bf16.msra.mxu0 %v913
    %960 = vmatprep.subr.bf16.mxu0 0
    %961 = vmatpush2.bf16.msra.mxu0 %v912
    %962 = vmatprep.subr.bf16.mxu0 0
    %963 = vmatpush2.bf16.msra.mxu0 %v911
    %964 = vmatprep.subr.bf16.mxu0 0
    %965 = vmatpush2.bf16.msra.mxu0 %v910
    %966 = vmatprep.mubr.bf16.mxu0 %v798
    %967 = vmatmul.mubr.bf16.gmra.mxu0 %v797
    %v968 = vpop.f32.mrf.mxu0
    %v969 = vadd.f32 %v836, %v968
    %v970 = vpop.f32.mrf.mxu0
    %v971 = vpop.f32.mrf.mxu0
    %v972 = vpop.f32.mrf.mxu0
    %973 = vdwg.mxu0
    %vm974 = vcmp.ge.f32.partialorder %v969, 0.0
    %v975 = vmul.f32 %v969, 0.01
    %v976 = vsel %vm974, %v969, %v975
    %v977 = vsel %vm56, %v976, 0.0
    %v978 = vrot.slane %v977, 4
    %v979 = vadd.f32 %v977, %v978
    %v980 = vrot.slane %v979, 2
    %v981 = vadd.f32 %v979, %v980
    %v982 = vrot.slane %v981, 1
    %v983 = vadd.f32 %v981, %v982
    %v984 = vmul.f32 %v983, %v142
    %v985 = vsub.f32 %v976, %v984
    %v986 = vmul.f32 %v985, %v985
    %v987 = vsel %vm56, %v986, 0.0
    %v988 = vrot.slane %v987, 4
    %v989 = vadd.f32 %v987, %v988
    %v990 = vrot.slane %v989, 2
    %v991 = vadd.f32 %v989, %v990
    %v992 = vrot.slane %v991, 1
    %v993 = vadd.f32 %v991, %v992
    %v994 = vmul.f32 %v993, %v142
    %v995 = vadd.f32 %v994, 1e-05
    %v996 = vrsqrt.pop %v995
    %v997 = vmul.f32 %v985, %v996
    %v998 = vpack.c.bf16 %v997, %v997
    %v999 = vld [vmem:[#allocation4 + $0x2f4] sm:$0xf]
    %v1000 = vld [vmem:[#allocation4 + $0x2fc] sm:$0xf]
    %v1001 = vld [vmem:[#allocation6 + $0x4] sm:$0x1]
    %v1003 = vlaneseq
    %v1004 = vshrl.u32 %v1003, 7
    %v1005 = vsub.s32 0, %v1004
    %v1006 = vrot.slane %v1001, %v1005
    %v1010 = vunpack.c.l.b16 %v999
    %v1011 = vunpack.c.l.b16 %v1000
    %v1012 = vpack.c.b16 %v1011, %v1010
    %v1015 = vsel %vm87, %v998, 0
    %1017 = vmatprep.subr.bf16.mxu0 0
    %1018 = vmatpush1.bf16.msra.mxu0 0
    %1019 = vmatprep.subr.bf16.mxu0 0
    %1020 = vmatpush1.bf16.msra.mxu0 0
    %1021 = vmatprep.subr.bf16.mxu0 0
    %1022 = vmatpush1.bf16.msra.mxu0 0
    %1023 = vmatprep.subr.bf16.mxu0 0
    %1024 = vmatpush1.bf16.msra.mxu0 0
    %1025 = vmatprep.subr.bf16.mxu0 0
    %1026 = vmatpush1.bf16.msra.mxu0 0
    %1027 = vmatprep.subr.bf16.mxu0 0
    %1028 = vmatpush1.bf16.msra.mxu0 0
    %1029 = vmatprep.subr.bf16.mxu0 0
    %1030 = vmatpush1.bf16.msra.mxu0 0
    %1031 = vmatprep.subr.bf16.mxu0 0
    %1032 = vmatpush1.bf16.msra.mxu0 %v1012
    %1033 = vmatprep.subr.bf16.mxu0 0
    %1034 = vmatpush2.bf16.msra.mxu0 0
    %1035 = vmatprep.subr.bf16.mxu0 0
    %1036 = vmatpush2.bf16.msra.mxu0 0
    %1037 = vmatprep.subr.bf16.mxu0 0
    %1038 = vmatpush2.bf16.msra.mxu0 0
    %1039 = vmatprep.subr.bf16.mxu0 0
    %1040 = vmatpush2.bf16.msra.mxu0 0
    %1041 = vmatprep.subr.bf16.mxu0 0
    %1042 = vmatpush2.bf16.msra.mxu0 0
    %1043 = vmatprep.subr.bf16.mxu0 0
    %1044 = vmatpush2.bf16.msra.mxu0 0
    %1045 = vmatprep.subr.bf16.mxu0 0
    %1046 = vmatpush2.bf16.msra.mxu0 0
    %1047 = vmatprep.subr.bf16.mxu0 0
    %1048 = vmatpush2.bf16.msra.mxu0 0
    %1049 = vmatprep.mubr.bf16.mxu0 0
    %1050 = vmatmul.mubr.bf16.gmra.mxu0 %v1015
    %v1051 = vpop.f32.mrf.mxu0
    %v1052 = vadd.f32 %v1006, %v1051
    %v1053 = vpop.f32.mrf.mxu0
    %v1054 = vpop.f32.mrf.mxu0
    %v1055 = vpop.f32.mrf.mxu0
    %1056 = vdwg.mxu0
    %v1057 = vld [vmem:[#allocation2] sm:$0x3]
    %v1058 = vpack.c.bf16 %v1057, %v1057
    %v1059 = vld [vmem:[#allocation4 + $0x320] sm:$0x1]
    %v1060 = vld [vmem:[#allocation6 + $0x5] sm:$0x1]
    %v1062 = vlaneseq
    %v1063 = vshrl.u32 %v1062, 7
    %v1064 = vsub.s32 0, %v1063
    %v1065 = vrot.slane %v1060, %v1064
    %vm1067 = vcmask 15360
    %v1069 = vsel %vm1067, %v1058, 0
    %vm1071 = vcmask 1040384
    %v1073 = vsel %vm1071, %v1059, 0
    %1075 = vmatprep.subr.bf16.mxu0 0
    %1076 = vmatpush1.bf16.msra.mxu0 0
    %1077 = vmatprep.subr.bf16.mxu0 0
    %1078 = vmatpush1.bf16.msra.mxu0 0
    %1079 = vmatprep.subr.bf16.mxu0 0
    %1080 = vmatpush1.bf16.msra.mxu0 0
    %1081 = vmatprep.subr.bf16.mxu0 0
    %1082 = vmatpush1.bf16.msra.mxu0 0
    %1083 = vmatprep.subr.bf16.mxu0 0
    %1084 = vmatpush1.bf16.msra.mxu0 0
    %1085 = vmatprep.subr.bf16.mxu0 0
    %1086 = vmatpush1.bf16.msra.mxu0 0
    %1087 = vmatprep.subr.bf16.mxu0 0
    %1088 = vmatpush1.bf16.msra.mxu0 0
    %1089 = vmatprep.subr.bf16.mxu0 0
    %1090 = vmatpush1.bf16.msra.mxu0 %v1073
    %1091 = vmatprep.subr.bf16.mxu0 0
    %1092 = vmatpush2.bf16.msra.mxu0 0
    %1093 = vmatprep.subr.bf16.mxu0 0
    %1094 = vmatpush2.bf16.msra.mxu0 0
    %1095 = vmatprep.subr.bf16.mxu0 0
    %1096 = vmatpush2.bf16.msra.mxu0 0
    %1097 = vmatprep.subr.bf16.mxu0 0
    %1098 = vmatpush2.bf16.msra.mxu0 0
    %1099 = vmatprep.subr.bf16.mxu0 0
    %1100 = vmatpush2.bf16.msra.mxu0 0
    %1101 = vmatprep.subr.bf16.mxu0 0
    %1102 = vmatpush2.bf16.msra.mxu0 0
    %1103 = vmatprep.subr.bf16.mxu0 0
    %1104 = vmatpush2.bf16.msra.mxu0 0
    %1105 = vmatprep.subr.bf16.mxu0 0
    %1106 = vmatpush2.bf16.msra.mxu0 0
    %1107 = vmatprep.mubr.bf16.mxu0 0
    %1108 = vmatmul.mubr.bf16.gmra.mxu0 %v1069
    %v1109 = vpop.f32.mrf.mxu0
    %v1110 = vadd.f32 %v1065, %v1109
    %v1111 = vpop.f32.mrf.mxu0
    %v1112 = vpop.f32.mrf.mxu0
    %v1113 = vpop.f32.mrf.mxu0
    %1114 = vdwg.mxu0
    %vm1115 = vcmp.ge.f32.partialorder %v1110, 0.0
    %v1116 = vmul.f32 %v1110, 0.01
    %v1117 = vsel %vm1115, %v1110, %v1116
    %vm1118 = vcmask 91136
    %v1119 = vsel %vm1118, %v1117, 0.0
    %v1120 = vrot.slane %v1119, 4
    %v1121 = vadd.f32 %v1119, %v1120
    %v1122 = vrot.slane %v1121, 2
    %v1123 = vadd.f32 %v1121, %v1122
    %v1124 = vrot.slane %v1123, 1
    %v1125 = vadd.f32 %v1123, %v1124
    %v1126 = vmul.f32 %v1125, %v142
    %v1127 = vsub.f32 %v1117, %v1126
    %v1128 = vmul.f32 %v1127, %v1127
    %v1129 = vsel %vm1118, %v1128, 0.0
    %v1130 = vrot.slane %v1129, 4
    %v1131 = vadd.f32 %v1129, %v1130
    %v1132 = vrot.slane %v1131, 2
    %v1133 = vadd.f32 %v1131, %v1132
    %v1134 = vrot.slane %v1133, 1
    %v1135 = vadd.f32 %v1133, %v1134
    %v1136 = vmul.f32 %v1135, %v142
    %v1137 = vadd.f32 %v1136, 1e-05
    %v1138 = vrsqrt.pop %v1137
    %v1139 = vmul.f32 %v1127, %v1138
    %v1140 = vpack.c.bf16 %v1139, %v1139
    %v1141 = vld [vmem:[#allocation4 + $0x304] sm:$0xf]
    %v1142 = vld [vmem:[#allocation4 + $0x30c] sm:$0x3]
    %v1143 = vld [vmem:[#allocation6 + $0x6] sm:$0x1]
    %v1145 = vlaneseq
    %v1146 = vshrl.u32 %v1145, 7
    %v1147 = vsub.s32 0, %v1146
    %v1148 = vrot.slane %v1143, %v1147
    %v1152 = vunpack.c.l.b16 %v1141
    %v1153 = vunpack.c.l.b16 %v1142
    %v1154 = vpack.c.b16 %v1153, %v1152
    %vm1155 = vcmask 97280
    %v1157 = vsel %vm1155, %v1140, 0
    %vm1159 = vcmask 1045504
    %v1161 = vsel %vm1159, %v1154, 0
    %1163 = vmatprep.subr.bf16.mxu0 0
    %1164 = vmatpush1.bf16.msra.mxu0 0
    %1165 = vmatprep.subr.bf16.mxu0 0
    %1166 = vmatpush1.bf16.msra.mxu0 0
    %1167 = vmatprep.subr.bf16.mxu0 0
    %1168 = vmatpush1.bf16.msra.mxu0 0
    %1169 = vmatprep.subr.bf16.mxu0 0
    %1170 = vmatpush1.bf16.msra.mxu0 0
    %1171 = vmatprep.subr.bf16.mxu0 0
    %1172 = vmatpush1.bf16.msra.mxu0 0
    %1173 = vmatprep.subr.bf16.mxu0 0
    %1174 = vmatpush1.bf16.msra.mxu0 0
    %1175 = vmatprep.subr.bf16.mxu0 0
    %1176 = vmatpush1.bf16.msra.mxu0 0
    %1177 = vmatprep.subr.bf16.mxu0 0
    %1178 = vmatpush1.bf16.msra.mxu0 %v1161
    %1179 = vmatprep.subr.bf16.mxu0 0
    %1180 = vmatpush2.bf16.msra.mxu0 0
    %1181 = vmatprep.subr.bf16.mxu0 0
    %1182 = vmatpush2.bf16.msra.mxu0 0
    %1183 = vmatprep.subr.bf16.mxu0 0
    %1184 = vmatpush2.bf16.msra.mxu0 0
    %1185 = vmatprep.subr.bf16.mxu0 0
    %1186 = vmatpush2.bf16.msra.mxu0 0
    %1187 = vmatprep.subr.bf16.mxu0 0
    %1188 = vmatpush2.bf16.msra.mxu0 0
    %1189 = vmatprep.subr.bf16.mxu0 0
    %1190 = vmatpush2.bf16.msra.mxu0 0
    %1191 = vmatprep.subr.bf16.mxu0 0
    %1192 = vmatpush2.bf16.msra.mxu0 0
    %1193 = vmatprep.subr.bf16.mxu0 0
    %1194 = vmatpush2.bf16.msra.mxu0 0
    %1195 = vmatprep.mubr.bf16.mxu0 0
    %1196 = vmatmul.mubr.bf16.gmra.mxu0 %v1157
    %v1197 = vpop.f32.mrf.mxu0
    %v1198 = vadd.f32 %v1148, %v1197
    %v1199 = vpop.f32.mrf.mxu0
    %v1200 = vpop.f32.mrf.mxu0
    %v1201 = vpop.f32.mrf.mxu0
    %1202 = vdwg.mxu0
    %vm1203 = vcmp.ge.f32.partialorder %v1198, 0.0
    %v1204 = vmul.f32 %v1198, 0.01
    %v1205 = vsel %vm1203, %v1198, %v1204
    %vm1206 = vcmask 287744
    %v1207 = vsel %vm1206, %v1205, 0.0
    %v1208 = vrot.slane %v1207, 4
    %v1209 = vadd.f32 %v1207, %v1208
    %v1210 = vrot.slane %v1209, 2
    %v1211 = vadd.f32 %v1209, %v1210
    %v1212 = vrot.slane %v1211, 1
    %v1213 = vadd.f32 %v1211, %v1212
    %v1214 = vmul.f32 %v1213, %v142
    %v1215 = vsub.f32 %v1205, %v1214
    %v1216 = vmul.f32 %v1215, %v1215
    %v1217 = vsel %vm1206, %v1216, 0.0
    %v1218 = vrot.slane %v1217, 4
    %v1219 = vadd.f32 %v1217, %v1218
    %v1220 = vrot.slane %v1219, 2
    %v1221 = vadd.f32 %v1219, %v1220
    %v1222 = vrot.slane %v1221, 1
    %v1223 = vadd.f32 %v1221, %v1222
    %v1224 = vmul.f32 %v1223, %v142
    %v1225 = vadd.f32 %v1224, 1e-05
    %v1226 = vrsqrt.pop %v1225
    %v1227 = vmul.f32 %v1215, %v1226
    %v1228 = vpack.c.bf16 %v1227, %v1227
    %v1229 = vld [vmem:[#allocation4 + $0x2a4] sm:$0xf]
    %v1230 = vld [vmem:[#allocation4 + $0x2ac] sm:$0xf]
    %v1231 = vld [vmem:[#allocation4 + $0x2b4] sm:$0xf]
    %v1232 = vld [vmem:[#allocation4 + $0x2bc] sm:$0xf]
    %v1233 = vld [vmem:[#allocation4 + $0x2c4] sm:$0x3]
    %v1234 = vld [vmem:[#allocation6 + $0x7] sm:$0x1]
    %v1236 = vlaneseq
    %v1237 = vshrl.u32 %v1236, 7
    %v1238 = vsub.s32 0, %v1237
    %v1239 = vrot.slane %v1234, %v1238
    %v1246 = vunpack.c.l.b16 %v1229
    %v1247 = vunpack.c.l.b16 %v1230
    %v1248 = vunpack.c.l.b16 %v1231
    %v1249 = vunpack.c.l.b16 %v1232
    %v1250 = vunpack.c.l.b16 %v1233
    %v1251 = vpack.c.b16 %v1247, %v1246
    %v1252 = vpack.c.b16 %v1249, %v1248
    %v1253 = vpack.c.b16 %v1250, %v1250
    %vm1256 = vcmask 293888
    %v1258 = vsel %vm1256, %v1228, 0
    %v1261 = vsel %vm134, %v1253, 0
    %1263 = vmatprep.subr.bf16.mxu0 0
    %1264 = vmatpush1.bf16.msra.mxu0 0
    %1265 = vmatprep.subr.bf16.mxu0 0
    %1266 = vmatpush1.bf16.msra.mxu0 0
    %1267 = vmatprep.subr.bf16.mxu0 0
    %1268 = vmatpush1.bf16.msra.mxu0 0
    %1269 = vmatprep.subr.bf16.mxu0 0
    %1270 = vmatpush1.bf16.msra.mxu0 0
    %1271 = vmatprep.subr.bf16.mxu0 0
    %1272 = vmatpush1.bf16.msra.mxu0 0
    %1273 = vmatprep.subr.bf16.mxu0 0
    %1274 = vmatpush1.bf16.msra.mxu0 %v1261
    %1275 = vmatprep.subr.bf16.mxu0 0
    %1276 = vmatpush1.bf16.msra.mxu0 %v1252
    %1277 = vmatprep.subr.bf16.mxu0 0
    %1278 = vmatpush1.bf16.msra.mxu0 %v1251
    %1279 = vmatprep.subr.bf16.mxu0 0
    %1280 = vmatpush2.bf16.msra.mxu0 0
    %1281 = vmatprep.subr.bf16.mxu0 0
    %1282 = vmatpush2.bf16.msra.mxu0 0
    %1283 = vmatprep.subr.bf16.mxu0 0
    %1284 = vmatpush2.bf16.msra.mxu0 0
    %1285 = vmatprep.subr.bf16.mxu0 0
    %1286 = vmatpush2.bf16.msra.mxu0 0
    %1287 = vmatprep.subr.bf16.mxu0 0
    %1288 = vmatpush2.bf16.msra.mxu0 0
    %1289 = vmatprep.subr.bf16.mxu0 0
    %1290 = vmatpush2.bf16.msra.mxu0 0
    %1291 = vmatprep.subr.bf16.mxu0 0
    %1292 = vmatpush2.bf16.msra.mxu0 0
    %1293 = vmatprep.subr.bf16.mxu0 0
    %1294 = vmatpush2.bf16.msra.mxu0 0
    %1295 = vmatprep.mubr.bf16.mxu0 0
    %1296 = vmatmul.mubr.bf16.gmra.mxu0 %v1258
    %v1297 = vpop.f32.mrf.mxu0
    %v1298 = vadd.f32 %v1239, %v1297
    %v1299 = vpop.f32.mrf.mxu0
    %v1300 = vpop.f32.mrf.mxu0
    %v1301 = vpop.f32.mrf.mxu0
    %1302 = vdwg.mxu0
    %vm1303 = vcmp.ge.f32.partialorder %v1298, 0.0
    %v1304 = vmul.f32 %v1298, 0.01
    %v1305 = vsel %vm1303, %v1298, %v1304
    %v1306 = vsel %vm1118, %v1305, 0.0
    %v1307 = vrot.slane %v1306, 4
    %v1308 = vadd.f32 %v1306, %v1307
    %v1309 = vrot.slane %v1308, 2
    %v1310 = vadd.f32 %v1308, %v1309
    %v1311 = vrot.slane %v1310, 1
    %v1312 = vadd.f32 %v1310, %v1311
    %v1313 = vmul.f32 %v1312, %v142
    %v1314 = vsub.f32 %v1305, %v1313
    %v1315 = vmul.f32 %v1314, %v1314
    %v1316 = vsel %vm1118, %v1315, 0.0
    %v1317 = vrot.slane %v1316, 4
    %v1318 = vadd.f32 %v1316, %v1317
    %v1319 = vrot.slane %v1318, 2
    %v1320 = vadd.f32 %v1318, %v1319
    %v1321 = vrot.slane %v1320, 1
    %v1322 = vadd.f32 %v1320, %v1321
    %v1323 = vmul.f32 %v1322, %v142
    %v1324 = vadd.f32 %v1323, 1e-05
    %v1325 = vrsqrt.pop %v1324
    %v1326 = vmul.f32 %v1314, %v1325
    %v1327 = vpack.c.bf16 %v1326, %v1326
    %v1328 = vld [vmem:[#allocation4 + $0x314] sm:$0xf]
    %v1329 = vld [vmem:[#allocation4 + $0x31c] sm:$0x3]
    %v1330 = vld [vmem:[#allocation6 + $0x8] sm:$0x1]
    %v1332 = vlaneseq
    %v1333 = vshrl.u32 %v1332, 7
    %v1334 = vsub.s32 0, %v1333
    %v1335 = vrot.slane %v1330, %v1334
    %v1339 = vunpack.c.l.b16 %v1328
    %v1340 = vunpack.c.l.b16 %v1329
    %v1341 = vpack.c.b16 %v1340, %v1339
    %v1343 = vsel %vm1155, %v1327, 0
    %v1346 = vsel %vm1159, %v1341, 0
    %1348 = vmatprep.subr.bf16.mxu0 0
    %1349 = vmatpush1.bf16.msra.mxu0 0
    %1350 = vmatprep.subr.bf16.mxu0 0
    %1351 = vmatpush1.bf16.msra.mxu0 0
    %1352 = vmatprep.subr.bf16.mxu0 0
    %1353 = vmatpush1.bf16.msra.mxu0 0
    %1354 = vmatprep.subr.bf16.mxu0 0
    %1355 = vmatpush1.bf16.msra.mxu0 0
    %1356 = vmatprep.subr.bf16.mxu0 0
    %1357 = vmatpush1.bf16.msra.mxu0 0
    %1358 = vmatprep.subr.bf16.mxu0 0
    %1359 = vmatpush1.bf16.msra.mxu0 0
    %1360 = vmatprep.subr.bf16.mxu0 0
    %1361 = vmatpush1.bf16.msra.mxu0 0
    %1362 = vmatprep.subr.bf16.mxu0 0
    %1363 = vmatpush1.bf16.msra.mxu0 %v1346
    %1364 = vmatprep.subr.bf16.mxu0 0
    %1365 = vmatpush2.bf16.msra.mxu0 0
    %1366 = vmatprep.subr.bf16.mxu0 0
    %1367 = vmatpush2.bf16.msra.mxu0 0
    %1368 = vmatprep.subr.bf16.mxu0 0
    %1369 = vmatpush2.bf16.msra.mxu0 0
    %1370 = vmatprep.subr.bf16.mxu0 0
    %1371 = vmatpush2.bf16.msra.mxu0 0
    %1372 = vmatprep.subr.bf16.mxu0 0
    %1373 = vmatpush2.bf16.msra.mxu0 0
    %1374 = vmatprep.subr.bf16.mxu0 0
    %1375 = vmatpush2.bf16.msra.mxu0 0
    %1376 = vmatprep.subr.bf16.mxu0 0
    %1377 = vmatpush2.bf16.msra.mxu0 0
    %1378 = vmatprep.subr.bf16.mxu0 0
    %1379 = vmatpush2.bf16.msra.mxu0 0
    %1380 = vmatprep.mubr.bf16.mxu0 0
    %1381 = vmatmul.mubr.bf16.gmra.mxu0 %v1343
    %v1382 = vpop.f32.mrf.mxu0
    %v1383 = vadd.f32 %v1335, %v1382
    %v1384 = vpop.f32.mrf.mxu0
    %v1385 = vpop.f32.mrf.mxu0
    %v1386 = vpop.f32.mrf.mxu0
    %1387 = vdwg.mxu0
    %v1388 = vpack.c.bf16 %v1383, %v1383
    %v1389 = vld [vmem:[#allocation4 + $0x2a0] sm:$0xf]
    %v1390 = vld [vmem:[#allocation4 + $0x2a8] sm:$0xf]
    %v1391 = vld [vmem:[#allocation4 + $0x2b0] sm:$0xf]
    %v1392 = vld [vmem:[#allocation4 + $0x2b8] sm:$0xf]
    %v1393 = vld [vmem:[#allocation4 + $0x2c0] sm:$0xf]
    %v1394 = vld [vmem:[#allocation4 + $0x2c8] sm:$0xf]
    %v1395 = vld [vmem:[#allocation4 + $0x2d0] sm:$0xf]
    %v1396 = vld [vmem:[#allocation4 + $0x2d8] sm:$0xf]
    %v1397 = vld [vmem:[#allocation4 + $0x2e0] sm:$0xf]
    %v1398 = vld [vmem:[#allocation4 + $0x2e8] sm:$0xf]
    %v1399 = vld [vmem:[#allocation4 + $0x2f0] sm:$0xf]
    %v1400 = vld [vmem:[#allocation4 + $0x2f8] sm:$0xf]
    %v1401 = vld [vmem:[#allocation4 + $0x300] sm:$0xf]
    %v1402 = vld [vmem:[#allocation4 + $0x308] sm:$0xf]
    %v1403 = vld [vmem:[#allocation4 + $0x310] sm:$0xf]
    %v1404 = vld [vmem:[#allocation4 + $0x318] sm:$0xf]
    %v1405 = vld [vmem:[#allocation6 + $0x9] sm:$0x1]
    %v1407 = vlaneseq
    %v1408 = vshrl.u32 %v1407, 7
    %v1409 = vsub.s32 0, %v1408
    %v1410 = vrot.slane %v1405, %v1409
    %v1428 = vunpack.c.l.b16 %v1389
    %v1429 = vunpack.c.l.b16 %v1390
    %v1430 = vunpack.c.l.b16 %v1391
    %v1431 = vunpack.c.l.b16 %v1392
    %v1432 = vunpack.c.l.b16 %v1393
    %v1433 = vunpack.c.l.b16 %v1394
    %v1434 = vunpack.c.l.b16 %v1395
    %v1435 = vunpack.c.l.b16 %v1396
    %v1436 = vunpack.c.l.b16 %v1397
    %v1437 = vunpack.c.l.b16 %v1398
    %v1438 = vunpack.c.l.b16 %v1399
    %v1439 = vunpack.c.l.b16 %v1400
    %v1440 = vunpack.c.l.b16 %v1401
    %v1441 = vunpack.c.l.b16 %v1402
    %v1442 = vunpack.c.l.b16 %v1403
    %v1443 = vunpack.c.l.b16 %v1404
    %v1444 = vpack.c.b16 %v1429, %v1428
    %v1445 = vpack.c.b16 %v1431, %v1430
    %v1446 = vpack.c.b16 %v1433, %v1432
    %v1447 = vpack.c.b16 %v1435, %v1434
    %v1448 = vpack.c.b16 %v1437, %v1436
    %v1449 = vpack.c.b16 %v1439, %v1438
    %v1450 = vpack.c.b16 %v1441, %v1440
    %v1451 = vpack.c.b16 %v1443, %v1442
    %1460 = vmatprep.subr.bf16.mxu0 0
    %1461 = vmatpush1.bf16.msra.mxu0 %v1451
    %1462 = vmatprep.subr.bf16.mxu0 0
    %1463 = vmatpush1.bf16.msra.mxu0 %v1450
    %1464 = vmatprep.subr.bf16.mxu0 0
    %1465 = vmatpush1.bf16.msra.mxu0 %v1449
    %1466 = vmatprep.subr.bf16.mxu0 0
    %1467 = vmatpush1.bf16.msra.mxu0 %v1448
    %1468 = vmatprep.subr.bf16.mxu0 0
    %1469 = vmatpush1.bf16.msra.mxu0 %v1447
    %1470 = vmatprep.subr.bf16.mxu0 0
    %1471 = vmatpush1.bf16.msra.mxu0 %v1446
    %1472 = vmatprep.subr.bf16.mxu0 0
    %1473 = vmatpush1.bf16.msra.mxu0 %v1445
    %1474 = vmatprep.subr.bf16.mxu0 0
    %1475 = vmatpush1.bf16.msra.mxu0 %v1444
    %1476 = vmatprep.subr.bf16.mxu0 0
    %1477 = vmatpush2.bf16.msra.mxu0 0
    %1478 = vmatprep.subr.bf16.mxu0 0
    %1479 = vmatpush2.bf16.msra.mxu0 0
    %1480 = vmatprep.subr.bf16.mxu0 0
    %1481 = vmatpush2.bf16.msra.mxu0 0
    %1482 = vmatprep.subr.bf16.mxu0 0
    %1483 = vmatpush2.bf16.msra.mxu0 0
    %1484 = vmatprep.subr.bf16.mxu0 0
    %1485 = vmatpush2.bf16.msra.mxu0 0
    %1486 = vmatprep.subr.bf16.mxu0 0
    %1487 = vmatpush2.bf16.msra.mxu0 0
    %1488 = vmatprep.subr.bf16.mxu0 0
    %1489 = vmatpush2.bf16.msra.mxu0 0
    %1490 = vmatprep.subr.bf16.mxu0 0
    %1491 = vmatpush2.bf16.msra.mxu0 0
    %1492 = vmatprep.mubr.bf16.mxu0 0
    %1493 = vmatmul.mubr.bf16.gmra.mxu0 %v1388
    %v1494 = vpop.f32.mrf.mxu0
    %v1495 = vadd.f32 %v1410, %v1494
    %v1496 = vpop.f32.mrf.mxu0
    %v1497 = vpop.f32.mrf.mxu0
    %v1498 = vpop.f32.mrf.mxu0
    %1499 = vdwg.mxu0
    %vm1500 = vcmp.ge.f32.partialorder %v1495, 0.0
    %v1501 = vmul.f32 %v1495, 0.01
    %v1502 = vsel %vm1500, %v1495, %v1501
    %v1503 = vsel %vm56, %v1502, 0.0
    %v1504 = vrot.slane %v1503, 4
    %v1505 = vadd.f32 %v1503, %v1504
    %v1506 = vrot.slane %v1505, 2
    %v1507 = vadd.f32 %v1505, %v1506
    %v1508 = vrot.slane %v1507, 1
    %v1509 = vadd.f32 %v1507, %v1508
    %v1510 = vmul.f32 %v1509, %v142
    %v1511 = vsub.f32 %v1502, %v1510
    %v1512 = vmul.f32 %v1511, %v1511
    %v1513 = vsel %vm56, %v1512, 0.0
    %v1514 = vrot.slane %v1513, 4
    %v1515 = vadd.f32 %v1513, %v1514
    %v1516 = vrot.slane %v1515, 2
    %v1517 = vadd.f32 %v1515, %v1516
    %v1518 = vrot.slane %v1517, 1
    %v1519 = vadd.f32 %v1517, %v1518
    %v1520 = vmul.f32 %v1519, %v142
    %v1521 = vadd.f32 %v1520, 1e-05
    %v1522 = vrsqrt.pop %v1521
    %v1523 = vmul.f32 %v1511, %v1522
    %v1524 = vpack.c.bf16 %v1523, %v1523
    %v1525 = vld [vmem:[#allocation4 + $0x10] sm:$0xff]
    %v1526 = vld [vmem:[#allocation4 + $0x18] sm:$0xff]
    %v1527 = vld [vmem:[#allocation6 + $0xa] sm:$0x3]
    %v1529 = vlaneseq
    %v1530 = vshrl.u32 %v1529, 7
    %v1531 = vsub.s32 0, %v1530
    %v1532 = vrot.slane %v1527, %v1531
    %v1533 = vlaneseq
    %v1534 = vshrl.u32 %v1533, 7
    %v1535 = vsub.s32 1, %v1534
    %v1536 = vrot.slane %v1527, %v1535
    %v1541 = vunpack.c.l.b16 %v1525
    %v1542 = vunpack.c.h.b16 %v1525
    %v1543 = vunpack.c.l.b16 %v1526
    %v1544 = vunpack.c.h.b16 %v1526
    %v1545 = vpack.c.b16 %v1543, %v1541
    %v1546 = vpack.c.b16 %v1544, %v1542
    %v1550 = vsel %vm87, %v1524, 0
    %1552 = vmatprep.subr.bf16.mxu0 0
    %1553 = vmatpush1.bf16.msra.mxu0 0
    %1554 = vmatprep.subr.bf16.mxu0 0
    %1555 = vmatpush1.bf16.msra.mxu0 0
    %1556 = vmatprep.subr.bf16.mxu0 0
    %1557 = vmatpush1.bf16.msra.mxu0 0
    %1558 = vmatprep.subr.bf16.mxu0 0
    %1559 = vmatpush1.bf16.msra.mxu0 0
    %1560 = vmatprep.subr.bf16.mxu0 0
    %1561 = vmatpush1.bf16.msra.mxu0 0
    %1562 = vmatprep.subr.bf16.mxu0 0
    %1563 = vmatpush1.bf16.msra.mxu0 0
    %1564 = vmatprep.subr.bf16.mxu0 0
    %1565 = vmatpush1.bf16.msra.mxu0 0
    %1566 = vmatprep.subr.bf16.mxu0 %v1546
    %1567 = vmatpush1.bf16.msra.mxu0 %v1545
    %1568 = vmatprep.subr.bf16.mxu0 0
    %1569 = vmatpush2.bf16.msra.mxu0 0
    %1570 = vmatprep.subr.bf16.mxu0 0
    %1571 = vmatpush2.bf16.msra.mxu0 0
    %1572 = vmatprep.subr.bf16.mxu0 0
    %1573 = vmatpush2.bf16.msra.mxu0 0
    %1574 = vmatprep.subr.bf16.mxu0 0
    %1575 = vmatpush2.bf16.msra.mxu0 0
    %1576 = vmatprep.subr.bf16.mxu0 0
    %1577 = vmatpush2.bf16.msra.mxu0 0
    %1578 = vmatprep.subr.bf16.mxu0 0
    %1579 = vmatpush2.bf16.msra.mxu0 0
    %1580 = vmatprep.subr.bf16.mxu0 0
    %1581 = vmatpush2.bf16.msra.mxu0 0
    %1582 = vmatprep.subr.bf16.mxu0 0
    %1583 = vmatpush2.bf16.msra.mxu0 0
    %1584 = vmatprep.mubr.bf16.mxu0 0
    %1585 = vmatmul.mubr.bf16.gmra.mxu0 %v1550
    %v1586 = vpop.f32.mrf.mxu0
    %v1587 = vadd.f32 %v1532, %v1586
    %v1588 = vpop.f32.mrf.mxu0
    %v1589 = vadd.f32 %v1536, %v1588
    %v1590 = vpop.f32.mrf.mxu0
    %v1591 = vpop.f32.mrf.mxu0
    %1592 = vdwg.mxu0
    %vm1593 = vcmp.ge.f32.partialorder %v1587, 0.0
    %vm1594 = vcmp.ge.f32.partialorder %v1589, 0.0
    %v1595 = vmul.f32 %v1587, 0.01
    %v1596 = vmul.f32 %v1589, 0.01
    %v1597 = vsel %vm1593, %v1587, %v1595
    %v1598 = vsel %vm1594, %v1589, %v1596
    %v1599 = vsel %vm134, %v1597, 0.0
    %v1600 = vrot.slane %v1599, 4
    %v1601 = vadd.f32 %v1599, %v1600
    %v1602 = vrot.slane %v1601, 2
    %v1603 = vadd.f32 %v1601, %v1602
    %v1604 = vrot.slane %v1603, 1
    %v1605 = vadd.f32 %v1603, %v1604
    %v1606 = vsel %vm134, %v1598, 0.0
    %v1607 = vrot.slane %v1606, 4
    %v1608 = vadd.f32 %v1606, %v1607
    %v1609 = vrot.slane %v1608, 2
    %v1610 = vadd.f32 %v1608, %v1609
    %v1611 = vrot.slane %v1610, 1
    %v1612 = vadd.f32 %v1610, %v1611
    %v1613 = vmul.f32 %v1605, %v142
    %v1614 = vmul.f32 %v1612, %v142
    %v1615 = vmul.f32 %v1597, %v1597
    %v1616 = vmul.f32 %v1598, %v1598
    %v1617 = vsel %vm134, %v1615, 0.0
    %v1618 = vrot.slane %v1617, 4
    %v1619 = vadd.f32 %v1617, %v1618
    %v1620 = vrot.slane %v1619, 2
    %v1621 = vadd.f32 %v1619, %v1620
    %v1622 = vrot.slane %v1621, 1
    %v1623 = vadd.f32 %v1621, %v1622
    %v1624 = vsel %vm134, %v1616, 0.0
    %v1625 = vrot.slane %v1624, 4
    %v1626 = vadd.f32 %v1624, %v1625
    %v1627 = vrot.slane %v1626, 2
    %v1628 = vadd.f32 %v1626, %v1627
    %v1629 = vrot.slane %v1628, 1
    %v1630 = vadd.f32 %v1628, %v1629
    %v1631 = vmul.f32 %v1623, %v142
    %v1632 = vmul.f32 %v1630, %v142
    %v1633 = vsel %vm155, %v1613, %v1631
    %v1634 = vsel %vm155, %v1614, %v1632
    %v1635 = vpack.c.bf16 %v1633, %v1633
    %v1636 = vpack.c.bf16 %v1634, %v1634
    %1637 = vmatprep.subr.bf16.mxu0 0
    %1638 = vmatpush1.bf16.msra.mxu0 %v638
    %1639 = vmatprep.subr.bf16.mxu0 0
    %1640 = vmatpush1.bf16.msra.mxu0 %v637
    %1641 = vmatprep.subr.bf16.mxu0 0
    %1642 = vmatpush1.bf16.msra.mxu0 %v636
    %1643 = vmatprep.subr.bf16.mxu0 0
    %1644 = vmatpush1.bf16.msra.mxu0 %v635
    %1645 = vmatprep.subr.bf16.mxu0 0
    %1646 = vmatpush1.bf16.msra.mxu0 %v634
    %1647 = vmatprep.subr.bf16.mxu0 0
    %1648 = vmatpush1.bf16.msra.mxu0 %v633
    %1649 = vmatprep.subr.bf16.mxu0 0
    %1650 = vmatpush1.bf16.msra.mxu0 %v632
    %1651 = vmatprep.subr.bf16.mxu0 0
    %1652 = vmatpush1.bf16.msra.mxu0 %v631
    %1653 = vmatprep.subr.bf16.mxu0 0
    %1654 = vmatpush2.bf16.msra.mxu0 %v646
    %1655 = vmatprep.subr.bf16.mxu0 0
    %1656 = vmatpush2.bf16.msra.mxu0 %v645
    %1657 = vmatprep.subr.bf16.mxu0 0
    %1658 = vmatpush2.bf16.msra.mxu0 %v644
    %1659 = vmatprep.subr.bf16.mxu0 0
    %1660 = vmatpush2.bf16.msra.mxu0 %v643
    %1661 = vmatprep.subr.bf16.mxu0 0
    %1662 = vmatpush2.bf16.msra.mxu0 %v642
    %1663 = vmatprep.subr.bf16.mxu0 0
    %1664 = vmatpush2.bf16.msra.mxu0 %v641
    %1665 = vmatprep.subr.bf16.mxu0 0
    %1666 = vmatpush2.bf16.msra.mxu0 %v640
    %1667 = vmatprep.subr.bf16.mxu0 0
    %1668 = vmatpush2.bf16.msra.mxu0 %v639
    %1669 = vmatprep.mubr.bf16.mxu0 %v1636
    %1670 = vmatmul.mubr.bf16.gmra.mxu0 %v1635
    %v1671 = vpop.f32.mrf.mxu0
    %v1672 = vadd.f32 0.0, %v1671
    %v1673 = vpop.f32.mrf.mxu0
    %v1674 = vpop.f32.mrf.mxu0
    %v1675 = vpop.f32.mrf.mxu0
    %1676 = vdwg.mxu0
    %v1677 = vmul.f32 %v1672, %v1672
    %v1679 = vrot.slane %v1677, 7
    %v1681 = vsub.f32 %v1672, %v1679
    %v1682 = vmax.f32 %v1681, 0.0
    %v1683 = vadd.f32 %v1682, 1e-05
    %v1684 = vrsqrt.pop %v1683
    %v1685 = vlaneseq
    %v1686 = vshrl.u32 %v1685, 7
    %v1687 = vsub.s32 0, %v1686
    %v1688 = vrot.slane %v1672, %v1687
    %v1689 = vlaneseq
    %v1690 = vshrl.u32 %v1689, 7
    %v1691 = vsub.s32 1, %v1690
    %v1692 = vrot.slane %v1684, %v1691
    %v1693 = vsel %vm155, %v1688, %v1692
    %v1694 = vpack.c.bf16 %v1693, %v1693
    %v1696 = vsel %vm87, %v1694, 0
    %1698 = vmatprep.subr.bf16.mxu0 0
    %1699 = vmatpush1.bf16.msra.mxu0 0
    %1700 = vmatprep.subr.bf16.mxu0 0
    %1701 = vmatpush1.bf16.msra.mxu0 0
    %1702 = vmatprep.subr.bf16.mxu0 0
    %1703 = vmatpush1.bf16.msra.mxu0 0
    %1704 = vmatprep.subr.bf16.mxu0 0
    %1705 = vmatpush1.bf16.msra.mxu0 0
    %1706 = vmatprep.subr.bf16.mxu0 0
    %1707 = vmatpush1.bf16.msra.mxu0 0
    %1708 = vmatprep.subr.bf16.mxu0 0
    %1709 = vmatpush1.bf16.msra.mxu0 0
    %1710 = vmatprep.subr.bf16.mxu0 0
    %1711 = vmatpush1.bf16.msra.mxu0 0
    %1712 = vmatprep.subr.bf16.mxu0 %v730
    %1713 = vmatpush1.bf16.msra.mxu0 %v729
    %1714 = vmatprep.subr.bf16.mxu0 0
    %1715 = vmatpush2.bf16.msra.mxu0 0
    %1716 = vmatprep.subr.bf16.mxu0 0
    %1717 = vmatpush2.bf16.msra.mxu0 0
    %1718 = vmatprep.subr.bf16.mxu0 0
    %1719 = vmatpush2.bf16.msra.mxu0 0
    %1720 = vmatprep.subr.bf16.mxu0 0
    %1721 = vmatpush2.bf16.msra.mxu0 0
    %1722 = vmatprep.subr.bf16.mxu0 0
    %1723 = vmatpush2.bf16.msra.mxu0 0
    %1724 = vmatprep.subr.bf16.mxu0 0
    %1725 = vmatpush2.bf16.msra.mxu0 0
    %1726 = vmatprep.subr.bf16.mxu0 0
    %1727 = vmatpush2.bf16.msra.mxu0 0
    %1728 = vmatprep.subr.bf16.mxu0 0
    %1729 = vmatpush2.bf16.msra.mxu0 0
    %1730 = vmatprep.mubr.bf16.mxu0 0
    %1731 = vmatmul.mubr.bf16.gmra.mxu0 %v1696
    %v1732 = vpop.f32.mrf.mxu0
    %v1733 = vadd.f32 0.0, %v1732
    %v1734 = vpop.f32.mrf.mxu0
    %v1735 = vadd.f32 0.0, %v1734
    %v1736 = vpop.f32.mrf.mxu0
    %v1737 = vpop.f32.mrf.mxu0
    %1738 = vdwg.mxu0
    %v1739 = vlaneseq
    %v1740 = vshrl.u32 %v1739, 7
    %v1741 = vsub.s32 0, %v1740
    %v1742 = vrot.slane %v1733, %v1741
    %v1743 = vlaneseq
    %v1744 = vshrl.u32 %v1743, 7
    %v1745 = vsub.s32 0, %v1744
    %v1746 = vrot.slane %v1735, %v1745
    %v1747 = vsub.f32 %v1597, %v1742
    %v1748 = vsub.f32 %v1598, %v1746
    %v1749 = vlaneseq
    %v1750 = vshrl.u32 %v1749, 7
    %v1751 = vsub.s32 1, %v1750
    %v1752 = vrot.slane %v1733, %v1751
    %v1753 = vlaneseq
    %v1754 = vshrl.u32 %v1753, 7
    %v1755 = vsub.s32 1, %v1754
    %v1756 = vrot.slane %v1735, %v1755
    %v1757 = vmul.f32 %v1747, %v1752
    %v1758 = vmul.f32 %v1748, %v1756
    %v1759 = vpack.c.bf16 %v1757, %v1757
    %v1760 = vpack.c.bf16 %v1758, %v1758
    %v1761 = vld [vmem:[#allocation4 + $0xa4] sm:$0xf]
    %v1762 = vld [vmem:[#allocation4 + $0xac] sm:$0xf]
    %v1763 = vld [vmem:[#allocation4 + $0xb4] sm:$0xf]
    %v1764 = vld [vmem:[#allocation4 + $0xbc] sm:$0xf]
    %v1765 = vld [vmem:[#allocation4 + $0xc4] sm:$0xf]
    %v1766 = vld [vmem:[#allocation4 + $0xcc] sm:$0xf]
    %v1767 = vld [vmem:[#allocation4 + $0xd4] sm:$0xf]
    %v1768 = vld [vmem:[#allocation4 + $0xdc] sm:$0xf]
    %v1769 = vld [vmem:[#allocation4 + $0xe4] sm:$0xf]
    %v1770 = vld [vmem:[#allocation4 + $0xec] sm:$0xf]
    %v1771 = vld [vmem:[#allocation4 + $0xf4] sm:$0xf]
    %v1772 = vld [vmem:[#allocation4 + $0xfc] sm:$0xf]
    %v1773 = vld [vmem:[#allocation4 + $0x104] sm:$0xf]
    %v1774 = vld [vmem:[#allocation4 + $0x10c] sm:$0xf]
    %v1775 = vld [vmem:[#allocation4 + $0x114] sm:$0xf]
    %v1776 = vld [vmem:[#allocation4 + $0x11c] sm:$0xf]
    %v1777 = vld [vmem:[#allocation4 + $0x124] sm:$0xf]
    %v1778 = vld [vmem:[#allocation4 + $0x12c] sm:$0xf]
    %v1779 = vld [vmem:[#allocation4 + $0x134] sm:$0xf]
    %v1780 = vld [vmem:[#allocation4 + $0x13c] sm:$0xf]
    %v1781 = vld [vmem:[#allocation4 + $0x144] sm:$0xf]
    %v1782 = vld [vmem:[#allocation4 + $0x14c] sm:$0xf]
    %v1783 = vld [vmem:[#allocation4 + $0x154] sm:$0xf]
    %v1784 = vld [vmem:[#allocation4 + $0x15c] sm:$0xf]
    %v1785 = vld [vmem:[#allocation4 + $0x164] sm:$0xf]
    %v1786 = vld [vmem:[#allocation4 + $0x16c] sm:$0xf]
    %v1787 = vld [vmem:[#allocation4 + $0x174] sm:$0xf]
    %v1788 = vld [vmem:[#allocation4 + $0x17c] sm:$0xf]
    %v1789 = vld [vmem:[#allocation4 + $0x184] sm:$0xf]
    %v1790 = vld [vmem:[#allocation4 + $0x18c] sm:$0xf]
    %v1791 = vld [vmem:[#allocation4 + $0x194] sm:$0xf]
    %v1792 = vld [vmem:[#allocation4 + $0x19c] sm:$0xf]
    %v1793 = vld [vmem:[#allocation6 + $0xc] sm:$0x1]
    %v1795 = vlaneseq
    %v1796 = vshrl.u32 %v1795, 7
    %v1797 = vsub.s32 0, %v1796
    %v1798 = vrot.slane %v1793, %v1797
    %v1832 = vunpack.c.l.b16 %v1761
    %v1833 = vunpack.c.l.b16 %v1762
    %v1834 = vunpack.c.l.b16 %v1763
    %v1835 = vunpack.c.l.b16 %v1764
    %v1836 = vunpack.c.l.b16 %v1765
    %v1837 = vunpack.c.l.b16 %v1766
    %v1838 = vunpack.c.l.b16 %v1767
    %v1839 = vunpack.c.l.b16 %v1768
    %v1840 = vunpack.c.l.b16 %v1769
    %v1841 = vunpack.c.l.b16 %v1770
    %v1842 = vunpack.c.l.b16 %v1771
    %v1843 = vunpack.c.l.b16 %v1772
    %v1844 = vunpack.c.l.b16 %v1773
    %v1845 = vunpack.c.l.b16 %v1774
    %v1846 = vunpack.c.l.b16 %v1775
    %v1847 = vunpack.c.l.b16 %v1776
    %v1848 = vunpack.c.l.b16 %v1777
    %v1849 = vunpack.c.l.b16 %v1778
    %v1850 = vunpack.c.l.b16 %v1779
    %v1851 = vunpack.c.l.b16 %v1780
    %v1852 = vunpack.c.l.b16 %v1781
    %v1853 = vunpack.c.l.b16 %v1782
    %v1854 = vunpack.c.l.b16 %v1783
    %v1855 = vunpack.c.l.b16 %v1784
    %v1856 = vunpack.c.l.b16 %v1785
    %v1857 = vunpack.c.l.b16 %v1786
    %v1858 = vunpack.c.l.b16 %v1787
    %v1859 = vunpack.c.l.b16 %v1788
    %v1860 = vunpack.c.l.b16 %v1789
    %v1861 = vunpack.c.l.b16 %v1790
    %v1862 = vunpack.c.l.b16 %v1791
    %v1863 = vunpack.c.l.b16 %v1792
    %v1864 = vpack.c.b16 %v1833, %v1832
    %v1865 = vpack.c.b16 %v1835, %v1834
    %v1866 = vpack.c.b16 %v1837, %v1836
    %v1867 = vpack.c.b16 %v1839, %v1838
    %v1868 = vpack.c.b16 %v1841, %v1840
    %v1869 = vpack.c.b16 %v1843, %v1842
    %v1870 = vpack.c.b16 %v1845, %v1844
    %v1871 = vpack.c.b16 %v1847, %v1846
    %v1872 = vpack.c.b16 %v1849, %v1848
    %v1873 = vpack.c.b16 %v1851, %v1850
    %v1874 = vpack.c.b16 %v1853, %v1852
    %v1875 = vpack.c.b16 %v1855, %v1854
    %v1876 = vpack.c.b16 %v1857, %v1856
    %v1877 = vpack.c.b16 %v1859, %v1858
    %v1878 = vpack.c.b16 %v1861, %v1860
    %v1879 = vpack.c.b16 %v1863, %v1862
    %1896 = vmatprep.subr.bf16.mxu0 0
    %1897 = vmatpush1.bf16.msra.mxu0 %v1871
    %1898 = vmatprep.subr.bf16.mxu0 0
    %1899 = vmatpush1.bf16.msra.mxu0 %v1870
    %1900 = vmatprep.subr.bf16.mxu0 0
    %1901 = vmatpush1.bf16.msra.mxu0 %v1869
    %1902 = vmatprep.subr.bf16.mxu0 0
    %1903 = vmatpush1.bf16.msra.mxu0 %v1868
    %1904 = vmatprep.subr.bf16.mxu0 0
    %1905 = vmatpush1.bf16.msra.mxu0 %v1867
    %1906 = vmatprep.subr.bf16.mxu0 0
    %1907 = vmatpush1.bf16.msra.mxu0 %v1866
    %1908 = vmatprep.subr.bf16.mxu0 0
    %1909 = vmatpush1.bf16.msra.mxu0 %v1865
    %1910 = vmatprep.subr.bf16.mxu0 0
    %1911 = vmatpush1.bf16.msra.mxu0 %v1864
    %1912 = vmatprep.subr.bf16.mxu0 0
    %1913 = vmatpush2.bf16.msra.mxu0 %v1879
    %1914 = vmatprep.subr.bf16.mxu0 0
    %1915 = vmatpush2.bf16.msra.mxu0 %v1878
    %1916 = vmatprep.subr.bf16.mxu0 0
    %1917 = vmatpush2.bf16.msra.mxu0 %v1877
    %1918 = vmatprep.subr.bf16.mxu0 0
    %1919 = vmatpush2.bf16.msra.mxu0 %v1876
    %1920 = vmatprep.subr.bf16.mxu0 0
    %1921 = vmatpush2.bf16.msra.mxu0 %v1875
    %1922 = vmatprep.subr.bf16.mxu0 0
    %1923 = vmatpush2.bf16.msra.mxu0 %v1874
    %1924 = vmatprep.subr.bf16.mxu0 0
    %1925 = vmatpush2.bf16.msra.mxu0 %v1873
    %1926 = vmatprep.subr.bf16.mxu0 0
    %1927 = vmatpush2.bf16.msra.mxu0 %v1872
    %1928 = vmatprep.mubr.bf16.mxu0 %v1760
    %1929 = vmatmul.mubr.bf16.gmra.mxu0 %v1759
    %v1930 = vpop.f32.mrf.mxu0
    %v1931 = vadd.f32 %v1798, %v1930
    %v1932 = vpop.f32.mrf.mxu0
    %v1933 = vpop.f32.mrf.mxu0
    %v1934 = vpop.f32.mrf.mxu0
    %1935 = vdwg.mxu0
    %vm1936 = vcmp.ge.f32.partialorder %v1931, 0.0
    %v1937 = vmul.f32 %v1931, 0.01
    %v1938 = vsel %vm1936, %v1931, %v1937
    %v1939 = vsel %vm134, %v1938, 0.0
    %v1940 = vrot.slane %v1939, 4
    %v1941 = vadd.f32 %v1939, %v1940
    %v1942 = vrot.slane %v1941, 2
    %v1943 = vadd.f32 %v1941, %v1942
    %v1944 = vrot.slane %v1943, 1
    %v1945 = vadd.f32 %v1943, %v1944
    %v1946 = vmul.f32 %v1945, %v142
    %v1947 = vmul.f32 %v1938, %v1938
    %v1948 = vsel %vm134, %v1947, 0.0
    %v1949 = vrot.slane %v1948, 4
    %v1950 = vadd.f32 %v1948, %v1949
    %v1951 = vrot.slane %v1950, 2
    %v1952 = vadd.f32 %v1950, %v1951
    %v1953 = vrot.slane %v1952, 1
    %v1954 = vadd.f32 %v1952, %v1953
    %v1955 = vmul.f32 %v1954, %v142
    %v1956 = vsel %vm155, %v1946, %v1955
    %v1957 = vpack.c.bf16 %v1956, %v1956
    %1958 = vmatprep.subr.bf16.mxu0 0
    %1959 = vmatpush1.bf16.msra.mxu0 %v213
    %1960 = vmatprep.subr.bf16.mxu0 0
    %1961 = vmatpush1.bf16.msra.mxu0 %v212
    %1962 = vmatprep.subr.bf16.mxu0 0
    %1963 = vmatpush1.bf16.msra.mxu0 %v211
    %1964 = vmatprep.subr.bf16.mxu0 0
    %1965 = vmatpush1.bf16.msra.mxu0 %v210
    %1966 = vmatprep.subr.bf16.mxu0 0
    %1967 = vmatpush1.bf16.msra.mxu0 %v209
    %1968 = vmatprep.subr.bf16.mxu0 0
    %1969 = vmatpush1.bf16.msra.mxu0 %v208
    %1970 = vmatprep.subr.bf16.mxu0 0
    %1971 = vmatpush1.bf16.msra.mxu0 %v207
    %1972 = vmatprep.subr.bf16.mxu0 0
    %1973 = vmatpush1.bf16.msra.mxu0 %v206
    %1974 = vmatprep.subr.bf16.mxu0 0
    %1975 = vmatpush2.bf16.msra.mxu0 0
    %1976 = vmatprep.subr.bf16.mxu0 0
    %1977 = vmatpush2.bf16.msra.mxu0 0
    %1978 = vmatprep.subr.bf16.mxu0 0
    %1979 = vmatpush2.bf16.msra.mxu0 0
    %1980 = vmatprep.subr.bf16.mxu0 0
    %1981 = vmatpush2.bf16.msra.mxu0 0
    %1982 = vmatprep.subr.bf16.mxu0 0
    %1983 = vmatpush2.bf16.msra.mxu0 0
    %1984 = vmatprep.subr.bf16.mxu0 0
    %1985 = vmatpush2.bf16.msra.mxu0 0
    %1986 = vmatprep.subr.bf16.mxu0 0
    %1987 = vmatpush2.bf16.msra.mxu0 0
    %1988 = vmatprep.subr.bf16.mxu0 0
    %1989 = vmatpush2.bf16.msra.mxu0 0
    %1990 = vmatprep.mubr.bf16.mxu0 0
    %1991 = vmatmul.mubr.bf16.gmra.mxu0 %v1957
    %v1992 = vpop.f32.mrf.mxu0
    %v1993 = vadd.f32 0.0, %v1992
    %v1994 = vpop.f32.mrf.mxu0
    %v1995 = vpop.f32.mrf.mxu0
    %v1996 = vpop.f32.mrf.mxu0
    %1997 = vdwg.mxu0
    %v1998 = vmul.f32 %v1993, %v1993
    %v2000 = vrot.slane %v1998, 7
    %v2002 = vsub.f32 %v1993, %v2000
    %v2003 = vmax.f32 %v2002, 0.0
    %v2004 = vadd.f32 %v2003, 1e-05
    %v2005 = vrsqrt.pop %v2004
    %v2006 = vlaneseq
    %v2007 = vshrl.u32 %v2006, 7
    %v2008 = vsub.s32 0, %v2007
    %v2009 = vrot.slane %v1993, %v2008
    %v2010 = vlaneseq
    %v2011 = vshrl.u32 %v2010, 7
    %v2012 = vsub.s32 1, %v2011
    %v2013 = vrot.slane %v2005, %v2012
    %v2014 = vsel %vm155, %v2009, %v2013
    %v2015 = vpack.c.bf16 %v2014, %v2014
    %v2017 = vsel %vm87, %v2015, 0
    %2019 = vmatprep.subr.bf16.mxu0 0
    %2020 = vmatpush1.bf16.msra.mxu0 0
    %2021 = vmatprep.subr.bf16.mxu0 0
    %2022 = vmatpush1.bf16.msra.mxu0 0
    %2023 = vmatprep.subr.bf16.mxu0 0
    %2024 = vmatpush1.bf16.msra.mxu0 0
    %2025 = vmatprep.subr.bf16.mxu0 0
    %2026 = vmatpush1.bf16.msra.mxu0 0
    %2027 = vmatprep.subr.bf16.mxu0 0
    %2028 = vmatpush1.bf16.msra.mxu0 0
    %2029 = vmatprep.subr.bf16.mxu0 0
    %2030 = vmatpush1.bf16.msra.mxu0 0
    %2031 = vmatprep.subr.bf16.mxu0 0
    %2032 = vmatpush1.bf16.msra.mxu0 0
    %2033 = vmatprep.subr.bf16.mxu0 0
    %2034 = vmatpush1.bf16.msra.mxu0 %v286
    %2035 = vmatprep.subr.bf16.mxu0 0
    %2036 = vmatpush2.bf16.msra.mxu0 0
    %2037 = vmatprep.subr.bf16.mxu0 0
    %2038 = vmatpush2.bf16.msra.mxu0 0
    %2039 = vmatprep.subr.bf16.mxu0 0
    %2040 = vmatpush2.bf16.msra.mxu0 0
    %2041 = vmatprep.subr.bf16.mxu0 0
    %2042 = vmatpush2.bf16.msra.mxu0 0
    %2043 = vmatprep.subr.bf16.mxu0 0
    %2044 = vmatpush2.bf16.msra.mxu0 0
    %2045 = vmatprep.subr.bf16.mxu0 0
    %2046 = vmatpush2.bf16.msra.mxu0 0
    %2047 = vmatprep.subr.bf16.mxu0 0
    %2048 = vmatpush2.bf16.msra.mxu0 0
    %2049 = vmatprep.subr.bf16.mxu0 0
    %2050 = vmatpush2.bf16.msra.mxu0 0
    %2051 = vmatprep.mubr.bf16.mxu0 0
    %2052 = vmatmul.mubr.bf16.gmra.mxu0 %v2017
    %v2053 = vpop.f32.mrf.mxu0
    %v2054 = vadd.f32 0.0, %v2053
    %v2055 = vpop.f32.mrf.mxu0
    %v2056 = vpop.f32.mrf.mxu0
    %v2057 = vpop.f32.mrf.mxu0
    %2058 = vdwg.mxu0
    %v2059 = vlaneseq
    %v2060 = vshrl.u32 %v2059, 7
    %v2061 = vsub.s32 0, %v2060
    %v2062 = vrot.slane %v2054, %v2061
    %v2063 = vsub.f32 %v1938, %v2062
    %v2064 = vlaneseq
    %v2065 = vshrl.u32 %v2064, 7
    %v2066 = vsub.s32 1, %v2065
    %v2067 = vrot.slane %v2054, %v2066
    %v2068 = vmul.f32 %v2063, %v2067
    %v2069 = vpack.c.bf16 %v2068, %v2068
    %v2070 = vld [vmem:[#allocation4 + $0x224] sm:$0xf]
    %v2071 = vld [vmem:[#allocation4 + $0x22c] sm:$0xf]
    %v2072 = vld [vmem:[#allocation4 + $0x234] sm:$0xf]
    %v2073 = vld [vmem:[#allocation4 + $0x23c] sm:$0xf]
    %v2074 = vld [vmem:[#allocation4 + $0x244] sm:$0xf]
    %v2075 = vld [vmem:[#allocation4 + $0x24c] sm:$0xf]
    %v2076 = vld [vmem:[#allocation4 + $0x254] sm:$0xf]
    %v2077 = vld [vmem:[#allocation4 + $0x25c] sm:$0xf]
    %v2078 = vld [vmem:[#allocation4 + $0x264] sm:$0xf]
    %v2079 = vld [vmem:[#allocation4 + $0x26c] sm:$0xf]
    %v2080 = vld [vmem:[#allocation4 + $0x274] sm:$0xf]
    %v2081 = vld [vmem:[#allocation4 + $0x27c] sm:$0xf]
    %v2082 = vld [vmem:[#allocation4 + $0x284] sm:$0xf]
    %v2083 = vld [vmem:[#allocation4 + $0x28c] sm:$0xf]
    %v2084 = vld [vmem:[#allocation4 + $0x294] sm:$0xf]
    %v2085 = vld [vmem:[#allocation4 + $0x29c] sm:$0xf]
    %v2086 = vld [vmem:[#allocation6 + $0xd] sm:$0x1]
    %v2088 = vlaneseq
    %v2089 = vshrl.u32 %v2088, 7
    %v2090 = vsub.s32 0, %v2089
    %v2091 = vrot.slane %v2086, %v2090
    %v2109 = vunpack.c.l.b16 %v2070
    %v2110 = vunpack.c.l.b16 %v2071
    %v2111 = vunpack.c.l.b16 %v2072
    %v2112 = vunpack.c.l.b16 %v2073
    %v2113 = vunpack.c.l.b16 %v2074
    %v2114 = vunpack.c.l.b16 %v2075
    %v2115 = vunpack.c.l.b16 %v2076
    %v2116 = vunpack.c.l.b16 %v2077
    %v2117 = vunpack.c.l.b16 %v2078
    %v2118 = vunpack.c.l.b16 %v2079
    %v2119 = vunpack.c.l.b16 %v2080
    %v2120 = vunpack.c.l.b16 %v2081
    %v2121 = vunpack.c.l.b16 %v2082
    %v2122 = vunpack.c.l.b16 %v2083
    %v2123 = vunpack.c.l.b16 %v2084
    %v2124 = vunpack.c.l.b16 %v2085
    %v2125 = vpack.c.b16 %v2110, %v2109
    %v2126 = vpack.c.b16 %v2112, %v2111
    %v2127 = vpack.c.b16 %v2114, %v2113
    %v2128 = vpack.c.b16 %v2116, %v2115
    %v2129 = vpack.c.b16 %v2118, %v2117
    %v2130 = vpack.c.b16 %v2120, %v2119
    %v2131 = vpack.c.b16 %v2122, %v2121
    %v2132 = vpack.c.b16 %v2124, %v2123
    %2141 = vmatprep.subr.bf16.mxu0 0
    %2142 = vmatpush1.bf16.msra.mxu0 %v2132
    %2143 = vmatprep.subr.bf16.mxu0 0
    %2144 = vmatpush1.bf16.msra.mxu0 %v2131
    %2145 = vmatprep.subr.bf16.mxu0 0
    %2146 = vmatpush1.bf16.msra.mxu0 %v2130
    %2147 = vmatprep.subr.bf16.mxu0 0
    %2148 = vmatpush1.bf16.msra.mxu0 %v2129
    %2149 = vmatprep.subr.bf16.mxu0 0
    %2150 = vmatpush1.bf16.msra.mxu0 %v2128
    %2151 = vmatprep.subr.bf16.mxu0 0
    %2152 = vmatpush1.bf16.msra.mxu0 %v2127
    %2153 = vmatprep.subr.bf16.mxu0 0
    %2154 = vmatpush1.bf16.msra.mxu0 %v2126
    %2155 = vmatprep.subr.bf16.mxu0 0
    %2156 = vmatpush1.bf16.msra.mxu0 %v2125
    %2157 = vmatprep.subr.bf16.mxu0 0
    %2158 = vmatpush2.bf16.msra.mxu0 0
    %2159 = vmatprep.subr.bf16.mxu0 0
    %2160 = vmatpush2.bf16.msra.mxu0 0
    %2161 = vmatprep.subr.bf16.mxu0 0
    %2162 = vmatpush2.bf16.msra.mxu0 0
    %2163 = vmatprep.subr.bf16.mxu0 0
    %2164 = vmatpush2.bf16.msra.mxu0 0
    %2165 = vmatprep.subr.bf16.mxu0 0
    %2166 = vmatpush2.bf16.msra.mxu0 0
    %2167 = vmatprep.subr.bf16.mxu0 0
    %2168 = vmatpush2.bf16.msra.mxu0 0
    %2169 = vmatprep.subr.bf16.mxu0 0
    %2170 = vmatpush2.bf16.msra.mxu0 0
    %2171 = vmatprep.subr.bf16.mxu0 0
    %2172 = vmatpush2.bf16.msra.mxu0 0
    %2173 = vmatprep.mubr.bf16.mxu0 0
    %2174 = vmatmul.mubr.bf16.gmra.mxu0 %v2069
    %v2175 = vpop.f32.mrf.mxu0
    %v2176 = vadd.f32 %v2091, %v2175
    %v2177 = vpop.f32.mrf.mxu0
    %v2178 = vpop.f32.mrf.mxu0
    %v2179 = vpop.f32.mrf.mxu0
    %2180 = vdwg.mxu0
    %vm2181 = vcmp.ge.f32.partialorder %v2176, 0.0
    %v2182 = vmul.f32 %v2176, 0.01
    %v2183 = vsel %vm2181, %v2176, %v2182
    %2184 = vst [vmem:[%s4] sm:$0x3] %v1052
    %s2185 = scalar_lea.vmem %s4, 2
    %2186 = vst [vmem:[%s2185] sm:$0x3] %v1383
    %s2187 = scalar_lea.vmem %s4, 4
    %2188 = vst [vmem:[%s2187] sm:$0x3] %v2183
    // Predicated region
    $region30: #{forward.1} parent=1 // pred_check
      _
    $region31: #{forward.1} parent=1 // pred_check_branch
      %2190 = sbr.rel (0) target = $region33
    $region32: #{forward.1} parent=1 // pred_region
      _
    $region33: #{forward.1} parent=1 // pred_fallthru
      _
    // Predicated region
    $region34: #{forward.1} parent=1 // pred_check
      _
    $region35: #{forward.1} parent=1 // pred_check_branch
      %2192 = sbr.rel (0) target = $region37
    $region36: #{forward.1} parent=1 // pred_region
      _
    $region37: #{forward.1} parent=1 // pred_fallthru
      _
    %2193 = vsyncpa [#allocation3], 1
    %2194 = vsyncpa [#allocation5], 1

</llo_original>
